<compile_context>
chip_gen: v7x
topology: tpu7x:2x2x1
jax: 0.10.0
libtpu: 0.0.40
codegen_flags: <defaults>
</compile_context>

<pallas_src>
import functools

import jax
import jax.numpy as jnp
from jax.experimental import pallas as pl
from jax.experimental.pallas import tpu as pltpu


HEAD_PAD = 128      # lane-dense padded width of the fused (reg || cls) head output
OUT_ROW_TILE = 8    # pad the 2B output rows up to a full f32 sublane tile


# ------------------------------- fused kernel ------------------------------- #

def _polishnet_kernel(x_ref, cls_ref, wc_ref, bc_ref, w1_ref, b1_ref,
                      w2_ref, b2_ref, wh_ref, bh_ref, out_ref, acc_ref,
                      *, batch, tp, last, rows):
    """One grid step = `tp` spatial positions of the merged fc1||cls1 K reduction."""
    k = pl.program_id(0)

    @pl.when(k == 0)
    def _init():
        acc_ref[...] = jnp.zeros_like(acc_ref)      # (rows, 2*last) f32 accumulator

    n2 = 2 * last
    wc = wc_ref[...]                                # (N*C, mid) bf16, resident
    bc = bc_ref[...]                                # (1, mid)   f32
    reg_c = jnp.zeros((batch, n2), jnp.float32)
    cls_c = jnp.zeros((batch, n2), jnp.float32)

    for t in range(tp):                             # static unroll over this chunk's p
        w1_t = w1_ref[t]                            # (mid, 2*last) bf16: K-slice [fc1|cls1]
        # 1x1 conv (+bias, ReLU) at spatial position p = k*tp + t, fused into the K step.
        conv_t = jnp.dot(x_ref[t], wc, preferred_element_type=jnp.float32)   # (B, mid)
        conv_t = jnp.maximum(conv_t + bc, 0.0).astype(jnp.bfloat16)
        reg_c = reg_c + jnp.dot(conv_t, w1_t, preferred_element_type=jnp.float32)
        cls_c = cls_c + jnp.dot(cls_ref[t], w1_t, preferred_element_type=jnp.float32)

    # rows [0,B): reg branch, rows [B,2B): cls branch, rows [2B,rows): zero padding.
    acc_ref[pl.ds(0, batch), :] = acc_ref[pl.ds(0, batch), :] + reg_c
    acc_ref[pl.ds(batch, batch), :] = acc_ref[pl.ds(batch, batch), :] + cls_c

    # ---- epilogue (layer 2 + heads) on the last K step only ----
    @pl.when(k == pl.num_programs(0) - 1)
    def _epilogue():
        y1 = jnp.maximum(acc_ref[...] + b1_ref[...], 0.0)        # ReLU on both branches
        row = jax.lax.broadcasted_iota(jnp.int32, (rows, 1), 0)
        is_reg = row < batch
        # pick the branch-specific half of the merged (rows, 2*last) result
        z2 = jnp.where(is_reg, y1[:, :last], y1[:, last:])
        y2 = jnp.dot(z2.astype(jnp.bfloat16), w2_ref[...],
                     preferred_element_type=jnp.float32) + b2_ref[...]
        # ReLU only on the reg branch after layer 2
        z3 = jnp.where(is_reg, jnp.maximum(y2[:, :last], 0.0), y2[:, last:])
        y3 = jnp.dot(z3.astype(jnp.bfloat16), wh_ref[...],
                     preferred_element_type=jnp.float32) + bh_ref[...]
        out_ref[...] = y3                                        # full (rows, 128) tile


# --------------------------- one-time weight packing -------------------------- #

def pack_params(params):
    """Host-side, one-time packing (kept OUT of the per-call jitted path)."""
    bf = jnp.bfloat16
    f32 = jnp.float32
    mid = params["conv_w"].shape[0]
    k_total, last = params["fc1_w"].shape
    assert k_total % mid == 0
    hw = k_total // mid
    assert params["cls1_w"].shape[0] == k_total, "merged fc1||cls1 requires in_dim == mid_dim"
    n_cls_out = params["cls_head_w"].shape[1]
    assert 4 + n_cls_out <= HEAD_PAD

    def perm(w):   # (mid*hw, n) -> (hw, mid, n): one K-slice per spatial position
        return w.reshape(mid, hw, -1).transpose(1, 0, 2)

    w1 = jnp.concatenate([perm(params["fc1_w"]), perm(params["cls1_w"])],
                         axis=2).astype(bf)                                 # (hw, mid, 2*last)
    b1 = jnp.concatenate([params["fc1_b"], params["cls1_b"]])[None, :].astype(f32)
    w2 = jnp.concatenate([params["fc2_w"], params["cls2_w"]], axis=1).astype(bf)
    b2 = jnp.concatenate([params["fc2_b"], params["cls2_b"]])[None, :].astype(f32)

    wh = jnp.zeros((last, HEAD_PAD), f32)
    wh = wh.at[:, 0:4].set(params["reg_w"]).at[:, 4:4 + n_cls_out].set(params["cls_head_w"])
    bh = jnp.zeros((1, HEAD_PAD), f32)
    bh = bh.at[0, 0:4].set(params["reg_b"]).at[0, 4:4 + n_cls_out].set(params["cls_head_b"])

    return dict(
        wc_t=params["conv_w"].T.astype(bf),                    # (N*C, mid)
        bc=params["conv_b"][None, :].astype(f32),              # (1, mid)
        w1=w1, b1=b1, w2=w2, b2=b2,
        wh=wh.astype(bf), bh=bh,
    )


# ------------------------------ forward wrapper ------------------------------ #

def polishnet_forward(feat_x, packed, *, n_cls_out):
    B, N, C, H, W = feat_x.shape
    HW = H * W
    NC = N * C
    mid = packed["wc_t"].shape[1]
    last = packed["w2"].shape[0]
    assert packed["w1"].shape[0] == HW and C == mid

    # Group `tp` spatial positions per grid step (7 for the 7x7 ROI) so the fc1||cls1
    # weight streams in tp*mid-row K chunks and per-step launch overhead amortizes.
    tp = 7 if HW % 7 == 0 else 1
    G = HW // tp
    rows = max(OUT_ROW_TILE, ((2 * B + OUT_ROW_TILE - 1) // OUT_ROW_TILE) * OUT_ROW_TILE)

    # Per-call activation prep (small): spatial-major layout so every grid step's block
    # is a simple leading-axis slice; cls activations go straight to bf16 (no f32 trip).
    x_t = feat_x.reshape(B, NC, HW).transpose(2, 0, 1).astype(jnp.bfloat16)        # (HW,B,NC)
    cls_t = feat_x[:, 0].reshape(B, C, HW).transpose(2, 0, 1).astype(jnp.bfloat16)  # (HW,B,C)

    kernel = functools.partial(_polishnet_kernel, batch=B, tp=tp, last=last, rows=rows)

    def _resident(arr):   # whole array resident in VMEM (same block every grid step)
        nd = arr.ndim
        return pl.BlockSpec(arr.shape, lambda k, _nd=nd: (0,) * _nd)

    out = pl.pallas_call(
        kernel,
        out_shape=jax.ShapeDtypeStruct((rows, HEAD_PAD), jnp.float32),
        grid=(G,),
        in_specs=[
            pl.BlockSpec((tp, B, NC), lambda k: (k, 0, 0)),            # conv input slices
            pl.BlockSpec((tp, B, C), lambda k: (k, 0, 0)),             # cls-branch slices
            _resident(packed["wc_t"]),
            _resident(packed["bc"]),
            pl.BlockSpec((tp, mid, 2 * last), lambda k: (k, 0, 0)),    # fc1||cls1 K tiles
            _resident(packed["b1"]),
            _resident(packed["w2"]),
            _resident(packed["b2"]),
            _resident(packed["wh"]),
            _resident(packed["bh"]),
        ],
        out_specs=pl.BlockSpec((rows, HEAD_PAD), lambda k: (0, 0)),
        scratch_shapes=[pltpu.VMEM((rows, 2 * last), jnp.float32)],
        compiler_params=pltpu.CompilerParams(
            dimension_semantics=("arbitrary",),        # the grid axis is a K reduction
            vmem_limit_bytes=32 * 1024 * 1024,
        ),
    )(x_t, cls_t, packed["wc_t"], packed["bc"], packed["w1"], packed["b1"],
      packed["w2"], packed["b2"], packed["wh"], packed["bh"])

    deltas = out[:B, 0:4]                      # rows [0,B)  : reg head
    classes = out[B:2 * B, 4:4 + n_cls_out]    # rows [B,2B) : cls head
    return deltas, classes


# ---------------------------- parameter creation ----------------------------- #

def _torch_like_linear_init(key, fan_in, fan_out):
    """PyTorch default Linear/Conv init: U(-1/sqrt(fan_in), 1/sqrt(fan_in))."""
    kw, kb = jax.random.split(key)
    bound = 1.0 / jnp.sqrt(jnp.float32(fan_in))
    w = jax.random.uniform(kw, (fan_out, fan_in), jnp.float32, -bound, bound)
    b = jax.random.uniform(kb, (fan_out,), jnp.float32, -bound, bound)
    return w, b


def make_params(key, in_dim, mid_dim, last_dim, num_classes, vote_num, hw):
    keys = jax.random.split(key, 7)
    nc = in_dim * vote_num
    cls_input = mid_dim * hw        # Merger.cls_input = mid_dim * 7 * 7
    cls_branch_in = in_dim * hw     # torch hard-codes 256*7*7 (in_dim == 256 there)

    conv_w, conv_b = _torch_like_linear_init(keys[0], nc, mid_dim)        # (mid, nc)
    fc1_w, fc1_b = _torch_like_linear_init(keys[1], cls_input, last_dim)
    fc2_w, fc2_b = _torch_like_linear_init(keys[2], last_dim, last_dim)
    cls1_w, cls1_b = _torch_like_linear_init(keys[3], cls_branch_in, last_dim)
    cls2_w, cls2_b = _torch_like_linear_init(keys[4], last_dim, last_dim)
    reg_w, reg_b = _torch_like_linear_init(keys[5], last_dim, 4)
    clsh_w, clsh_b = _torch_like_linear_init(keys[6], last_dim, num_classes + 1)

    # Linear weights stored pre-transposed to (in, out).
    return dict(
        conv_w=conv_w, conv_b=conv_b,
        fc1_w=fc1_w.T, fc1_b=fc1_b,
        fc2_w=fc2_w.T, fc2_b=fc2_b,
        cls1_w=cls1_w.T, cls1_b=cls1_b,
        cls2_w=cls2_w.T, cls2_b=cls2_b,
        reg_w=reg_w.T, reg_b=reg_b,
        cls_head_w=clsh_w.T, cls_head_b=clsh_b,
    )


# ------------------------------ pure-JAX reference --------------------------- #

def polishnet_reference(feat_x, params):
    """Mirrors the kernel math: bf16 matmul operands, f32 accumulation/epilogues."""
    B, N, C, H, W = feat_x.shape
    HW = H * W
    bf = jnp.bfloat16

    def lin(x, w, b):
        return jnp.dot(x.astype(bf), w.astype(bf),
                       preferred_element_type=jnp.float32) + b

    x_bf = feat_x.reshape(B, N * C, HW).astype(bf)
    conv = jnp.einsum("mk,bkp->bmp", params["conv_w"].astype(bf), x_bf,
                      preferred_element_type=jnp.float32)
    conv = jnp.maximum(conv + params["conv_b"][None, :, None], 0.0)
    reg_in = conv.reshape(B, -1)                                  # channel-major flatten

    h1 = jnp.maximum(lin(reg_in, params["fc1_w"], params["fc1_b"]), 0.0)
    reg_x = jnp.maximum(lin(h1, params["fc2_w"], params["fc2_b"]), 0.0)
    deltas = lin(reg_x, params["reg_w"], params["reg_b"])

    cls_in = feat_x[:, 0].reshape(B, C * HW)
    c1 = jnp.maximum(lin(cls_in, params["cls1_w"], params["cls1_b"]), 0.0)
    cls_x = lin(c1, params["cls2_w"], params["cls2_b"])           # no final ReLU
    classes = lin(cls_x, params["cls_head_w"], params["cls_head_b"])
    return deltas, classes


# ----------------------------------- main ------------------------------------ #

if __name__ == "__main__":
    B = 2
    IN_DIM = 8
    MID_DIM = 8
    LAST_DIM = 64
    NUM_CLASSES = 20
    VOTE_NUM = 7
    H = W = 7          # spatial must be 7x7 (cls_input = mid_dim * 7 * 7)

    key = jax.random.PRNGKey(0)
    k_x, k_p = jax.random.split(key)

    feat_x = jax.random.normal(k_x, (B, VOTE_NUM, IN_DIM, H, W), jnp.float32)
    params = make_params(k_p, IN_DIM, MID_DIM, LAST_DIM, NUM_CLASSES, VOTE_NUM, H * W)

    packed = pack_params(params)   # one-time weight packing, outside the jitted path
    fwd = jax.jit(functools.partial(polishnet_forward, n_cls_out=NUM_CLASSES + 1))
    deltas, classes = fwd(feat_x, packed)
    deltas, classes = jax.block_until_ready((deltas, classes))

    ref_deltas, ref_classes = polishnet_reference(feat_x, params)
    assert deltas.shape == (B, 4)
    assert classes.shape == (B, NUM_CLASSES + 1)
    assert jnp.allclose(deltas, ref_deltas, atol=2e-3, rtol=2e-3)
    assert jnp.allclose(classes, ref_classes, atol=2e-3, rtol=2e-3)

    print("KERNEL_OK")
</pallas_src>

<mosaic_0001>
module attributes {stable_mosaic.version = 11 : i64} {
  func.func @_polishnet_kernel(%arg0: i32, %arg1: memref<7x2x56xbf16, #tpu.memory_space<vmem>>, %arg2: memref<7x2x8xbf16, #tpu.memory_space<vmem>>, %arg3: memref<56x8xbf16, #tpu.memory_space<vmem>>, %arg4: memref<1x8xf32, #tpu.memory_space<vmem>>, %arg5: memref<7x8x128xbf16, #tpu.memory_space<vmem>>, %arg6: memref<1x128xf32, #tpu.memory_space<vmem>>, %arg7: memref<64x128xbf16, #tpu.memory_space<vmem>>, %arg8: memref<1x128xf32, #tpu.memory_space<vmem>>, %arg9: memref<64x128xbf16, #tpu.memory_space<vmem>>, %arg10: memref<1x128xf32, #tpu.memory_space<vmem>>, %arg11: memref<8x128xf32, #tpu.memory_space<vmem>>, %arg12: memref<8x128xf32, #tpu.memory_space<vmem>>) attributes {dimension_semantics = [#tpu.dimension_semantics<arbitrary>], iteration_bounds = array<i64: 7>, scalar_prefetch = 0 : i64, scratch_operands = 1 : i64, tpu.core_type = #tpu.core_type<tc>, window_params = [{transform_indices = @transform_0, window_bounds = array<i64: 7, 2, 56>}, {transform_indices = @transform_1, window_bounds = array<i64: 7, 2, 8>}, {pipeline_mode = #tpu.pipeline_mode<synchronous>, transform_indices = @transform_2, window_bounds = array<i64: 56, 8>}, {pipeline_mode = #tpu.pipeline_mode<synchronous>, transform_indices = @transform_3, window_bounds = array<i64: 1, 8>}, {transform_indices = @transform_4, window_bounds = array<i64: 7, 8, 128>}, {pipeline_mode = #tpu.pipeline_mode<synchronous>, transform_indices = @transform_5, window_bounds = array<i64: 1, 128>}, {pipeline_mode = #tpu.pipeline_mode<synchronous>, transform_indices = @transform_6, window_bounds = array<i64: 64, 128>}, {pipeline_mode = #tpu.pipeline_mode<synchronous>, transform_indices = @transform_7, window_bounds = array<i64: 1, 128>}, {pipeline_mode = #tpu.pipeline_mode<synchronous>, transform_indices = @transform_8, window_bounds = array<i64: 64, 128>}, {pipeline_mode = #tpu.pipeline_mode<synchronous>, transform_indices = @transform_9, window_bounds = array<i64: 1, 128>}, {pipeline_mode = #tpu.pipeline_mode<synchronous>, transform_indices = @transform_10, window_bounds = array<i64: 8, 128>}]} {
    %c0_i32 = arith.constant 0 : i32
    %0 = arith.cmpi eq, %arg0, %c0_i32 : i32
    %1 = arith.extui %0 : i1 to i32
    %c0_i32_0 = arith.constant 0 : i32
    %2 = arith.cmpi ne, %1, %c0_i32_0 : i32
    scf.if %2 {
      %cst_99 = arith.constant 0.000000e+00 : f32
      %128 = vector.broadcast %cst_99 : f32 to vector<8x128xf32>
      %c0_100 = arith.constant 0 : index
      %c0_101 = arith.constant 0 : index
      %129 = vector.load %arg12[%c0_100, %c0_101] : memref<8x128xf32, #tpu.memory_space<vmem>>, vector<8x128xf32>
      tpu.vector_store %arg12[%c0_100, %c0_101], %128 {strides = array<i32>} : memref<8x128xf32, #tpu.memory_space<vmem>>, vector<8x128xf32>,
    } else {
    }
    %c0 = arith.constant 0 : index
    %c0_1 = arith.constant 0 : index
    %3 = vector.load %arg3[%c0, %c0_1] : memref<56x8xbf16, #tpu.memory_space<vmem>>, vector<56x8xbf16>
    %c0_2 = arith.constant 0 : index
    %c0_3 = arith.constant 0 : index
    %4 = vector.load %arg4[%c0_2, %c0_3] : memref<1x8xf32, #tpu.memory_space<vmem>>, vector<1x8xf32>
    %cst = arith.constant 0.000000e+00 : f32
    %5 = vector.broadcast %cst : f32 to vector<2x128xf32>
    %cst_4 = arith.constant 0.000000e+00 : f32
    %6 = vector.broadcast %cst_4 : f32 to vector<2x128xf32>
    %c0_5 = arith.constant 0 : index
    %c0_6 = arith.constant 0 : index
    %c0_7 = arith.constant 0 : index
    %7 = vector.load %arg5[%c0_5, %c0_6, %c0_7] : memref<7x8x128xbf16, #tpu.memory_space<vmem>>, vector<1x8x128xbf16>
    %8 = vector.shape_cast %7 : vector<1x8x128xbf16> to vector<8x128xbf16>
    %c0_8 = arith.constant 0 : index
    %c0_9 = arith.constant 0 : index
    %c0_10 = arith.constant 0 : index
    %9 = vector.load %arg1[%c0_8, %c0_9, %c0_10] : memref<7x2x56xbf16, #tpu.memory_space<vmem>>, vector<1x2x56xbf16>
    %10 = vector.shape_cast %9 : vector<1x2x56xbf16> to vector<2x56xbf16>
    %cst_11 = arith.constant dense<0.000000e+00> : vector<2x8xf32>
    %11 = tpu.matmul %10, %3, %cst_11 {dimension_numbers = #tpu.dot_dimension_numbers<[1], [0], [0], [1], [0, 0, 1, 1], [], []>} : vector<2x56xbf16>, vector<56x8xbf16>, vector<2x8xf32> -> vector<2x8xf32>
    %12 = vector.broadcast %4 : vector<1x8xf32> to vector<2x8xf32>
    %13 = arith.addf %11, %12 : vector<2x8xf32>
    %cst_12 = arith.constant 0.000000e+00 : f32
    %14 = vector.broadcast %cst_12 : f32 to vector<2x8xf32>
    %15 = arith.maximumf %13, %14 : vector<2x8xf32>
    %16 = arith.truncf %15 : vector<2x8xf32> to vector<2x8xbf16>
    %cst_13 = arith.constant dense<0.000000e+00> : vector<2x128xf32>
    %17 = tpu.matmul %16, %8, %cst_13 {dimension_numbers = #tpu.dot_dimension_numbers<[1], [0], [0], [1], [0, 0, 1, 1], [], []>} : vector<2x8xbf16>, vector<8x128xbf16>, vector<2x128xf32> -> vector<2x128xf32>
    %18 = arith.addf %5, %17 : vector<2x128xf32>
    %c0_14 = arith.constant 0 : index
    %c0_15 = arith.constant 0 : index
    %c0_16 = arith.constant 0 : index
    %19 = vector.load %arg2[%c0_14, %c0_15, %c0_16] : memref<7x2x8xbf16, #tpu.memory_space<vmem>>, vector<1x2x8xbf16>
    %20 = vector.shape_cast %19 : vector<1x2x8xbf16> to vector<2x8xbf16>
    %cst_17 = arith.constant dense<0.000000e+00> : vector<2x128xf32>
    %21 = tpu.matmul %20, %8, %cst_17 {dimension_numbers = #tpu.dot_dimension_numbers<[1], [0], [0], [1], [0, 0, 1, 1], [], []>} : vector<2x8xbf16>, vector<8x128xbf16>, vector<2x128xf32> -> vector<2x128xf32>
    %22 = arith.addf %6, %21 : vector<2x128xf32>
    %c1 = arith.constant 1 : index
    %c0_18 = arith.constant 0 : index
    %c0_19 = arith.constant 0 : index
    %23 = vector.load %arg5[%c1, %c0_18, %c0_19] : memref<7x8x128xbf16, #tpu.memory_space<vmem>>, vector<1x8x128xbf16>
    %24 = vector.shape_cast %23 : vector<1x8x128xbf16> to vector<8x128xbf16>
    %c1_20 = arith.constant 1 : index
    %c0_21 = arith.constant 0 : index
    %c0_22 = arith.constant 0 : index
    %25 = vector.load %arg1[%c1_20, %c0_21, %c0_22] : memref<7x2x56xbf16, #tpu.memory_space<vmem>>, vector<1x2x56xbf16>
    %26 = vector.shape_cast %25 : vector<1x2x56xbf16> to vector<2x56xbf16>
    %cst_23 = arith.constant dense<0.000000e+00> : vector<2x8xf32>
    %27 = tpu.matmul %26, %3, %cst_23 {dimension_numbers = #tpu.dot_dimension_numbers<[1], [0], [0], [1], [0, 0, 1, 1], [], []>} : vector<2x56xbf16>, vector<56x8xbf16>, vector<2x8xf32> -> vector<2x8xf32>
    %28 = vector.broadcast %4 : vector<1x8xf32> to vector<2x8xf32>
    %29 = arith.addf %27, %28 : vector<2x8xf32>
    %cst_24 = arith.constant 0.000000e+00 : f32
    %30 = vector.broadcast %cst_24 : f32 to vector<2x8xf32>
    %31 = arith.maximumf %29, %30 : vector<2x8xf32>
    %32 = arith.truncf %31 : vector<2x8xf32> to vector<2x8xbf16>
    %cst_25 = arith.constant dense<0.000000e+00> : vector<2x128xf32>
    %33 = tpu.matmul %32, %24, %cst_25 {dimension_numbers = #tpu.dot_dimension_numbers<[1], [0], [0], [1], [0, 0, 1, 1], [], []>} : vector<2x8xbf16>, vector<8x128xbf16>, vector<2x128xf32> -> vector<2x128xf32>
    %34 = arith.addf %18, %33 : vector<2x128xf32>
    %c1_26 = arith.constant 1 : index
    %c0_27 = arith.constant 0 : index
    %c0_28 = arith.constant 0 : index
    %35 = vector.load %arg2[%c1_26, %c0_27, %c0_28] : memref<7x2x8xbf16, #tpu.memory_space<vmem>>, vector<1x2x8xbf16>
    %36 = vector.shape_cast %35 : vector<1x2x8xbf16> to vector<2x8xbf16>
    %cst_29 = arith.constant dense<0.000000e+00> : vector<2x128xf32>
    %37 = tpu.matmul %36, %24, %cst_29 {dimension_numbers = #tpu.dot_dimension_numbers<[1], [0], [0], [1], [0, 0, 1, 1], [], []>} : vector<2x8xbf16>, vector<8x128xbf16>, vector<2x128xf32> -> vector<2x128xf32>
    %38 = arith.addf %22, %37 : vector<2x128xf32>
    %c2 = arith.constant 2 : index
    %c0_30 = arith.constant 0 : index
    %c0_31 = arith.constant 0 : index
    %39 = vector.load %arg5[%c2, %c0_30, %c0_31] : memref<7x8x128xbf16, #tpu.memory_space<vmem>>, vector<1x8x128xbf16>
    %40 = vector.shape_cast %39 : vector<1x8x128xbf16> to vector<8x128xbf16>
    %c2_32 = arith.constant 2 : index
    %c0_33 = arith.constant 0 : index
    %c0_34 = arith.constant 0 : index
    %41 = vector.load %arg1[%c2_32, %c0_33, %c0_34] : memref<7x2x56xbf16, #tpu.memory_space<vmem>>, vector<1x2x56xbf16>
    %42 = vector.shape_cast %41 : vector<1x2x56xbf16> to vector<2x56xbf16>
    %cst_35 = arith.constant dense<0.000000e+00> : vector<2x8xf32>
    %43 = tpu.matmul %42, %3, %cst_35 {dimension_numbers = #tpu.dot_dimension_numbers<[1], [0], [0], [1], [0, 0, 1, 1], [], []>} : vector<2x56xbf16>, vector<56x8xbf16>, vector<2x8xf32> -> vector<2x8xf32>
    %44 = vector.broadcast %4 : vector<1x8xf32> to vector<2x8xf32>
    %45 = arith.addf %43, %44 : vector<2x8xf32>
    %cst_36 = arith.constant 0.000000e+00 : f32
    %46 = vector.broadcast %cst_36 : f32 to vector<2x8xf32>
    %47 = arith.maximumf %45, %46 : vector<2x8xf32>
    %48 = arith.truncf %47 : vector<2x8xf32> to vector<2x8xbf16>
    %cst_37 = arith.constant dense<0.000000e+00> : vector<2x128xf32>
    %49 = tpu.matmul %48, %40, %cst_37 {dimension_numbers = #tpu.dot_dimension_numbers<[1], [0], [0], [1], [0, 0, 1, 1], [], []>} : vector<2x8xbf16>, vector<8x128xbf16>, vector<2x128xf32> -> vector<2x128xf32>
    %50 = arith.addf %34, %49 : vector<2x128xf32>
    %c2_38 = arith.constant 2 : index
    %c0_39 = arith.constant 0 : index
    %c0_40 = arith.constant 0 : index
    %51 = vector.load %arg2[%c2_38, %c0_39, %c0_40] : memref<7x2x8xbf16, #tpu.memory_space<vmem>>, vector<1x2x8xbf16>
    %52 = vector.shape_cast %51 : vector<1x2x8xbf16> to vector<2x8xbf16>
    %cst_41 = arith.constant dense<0.000000e+00> : vector<2x128xf32>
    %53 = tpu.matmul %52, %40, %cst_41 {dimension_numbers = #tpu.dot_dimension_numbers<[1], [0], [0], [1], [0, 0, 1, 1], [], []>} : vector<2x8xbf16>, vector<8x128xbf16>, vector<2x128xf32> -> vector<2x128xf32>
    %54 = arith.addf %38, %53 : vector<2x128xf32>
    %c3 = arith.constant 3 : index
    %c0_42 = arith.constant 0 : index
    %c0_43 = arith.constant 0 : index
    %55 = vector.load %arg5[%c3, %c0_42, %c0_43] : memref<7x8x128xbf16, #tpu.memory_space<vmem>>, vector<1x8x128xbf16>
    %56 = vector.shape_cast %55 : vector<1x8x128xbf16> to vector<8x128xbf16>
    %c3_44 = arith.constant 3 : index
    %c0_45 = arith.constant 0 : index
    %c0_46 = arith.constant 0 : index
    %57 = vector.load %arg1[%c3_44, %c0_45, %c0_46] : memref<7x2x56xbf16, #tpu.memory_space<vmem>>, vector<1x2x56xbf16>
    %58 = vector.shape_cast %57 : vector<1x2x56xbf16> to vector<2x56xbf16>
    %cst_47 = arith.constant dense<0.000000e+00> : vector<2x8xf32>
    %59 = tpu.matmul %58, %3, %cst_47 {dimension_numbers = #tpu.dot_dimension_numbers<[1], [0], [0], [1], [0, 0, 1, 1], [], []>} : vector<2x56xbf16>, vector<56x8xbf16>, vector<2x8xf32> -> vector<2x8xf32>
    %60 = vector.broadcast %4 : vector<1x8xf32> to vector<2x8xf32>
    %61 = arith.addf %59, %60 : vector<2x8xf32>
    %cst_48 = arith.constant 0.000000e+00 : f32
    %62 = vector.broadcast %cst_48 : f32 to vector<2x8xf32>
    %63 = arith.maximumf %61, %62 : vector<2x8xf32>
    %64 = arith.truncf %63 : vector<2x8xf32> to vector<2x8xbf16>
    %cst_49 = arith.constant dense<0.000000e+00> : vector<2x128xf32>
    %65 = tpu.matmul %64, %56, %cst_49 {dimension_numbers = #tpu.dot_dimension_numbers<[1], [0], [0], [1], [0, 0, 1, 1], [], []>} : vector<2x8xbf16>, vector<8x128xbf16>, vector<2x128xf32> -> vector<2x128xf32>
    %66 = arith.addf %50, %65 : vector<2x128xf32>
    %c3_50 = arith.constant 3 : index
    %c0_51 = arith.constant 0 : index
    %c0_52 = arith.constant 0 : index
    %67 = vector.load %arg2[%c3_50, %c0_51, %c0_52] : memref<7x2x8xbf16, #tpu.memory_space<vmem>>, vector<1x2x8xbf16>
    %68 = vector.shape_cast %67 : vector<1x2x8xbf16> to vector<2x8xbf16>
    %cst_53 = arith.constant dense<0.000000e+00> : vector<2x128xf32>
    %69 = tpu.matmul %68, %56, %cst_53 {dimension_numbers = #tpu.dot_dimension_numbers<[1], [0], [0], [1], [0, 0, 1, 1], [], []>} : vector<2x8xbf16>, vector<8x128xbf16>, vector<2x128xf32> -> vector<2x128xf32>
    %70 = arith.addf %54, %69 : vector<2x128xf32>
    %c4 = arith.constant 4 : index
    %c0_54 = arith.constant 0 : index
    %c0_55 = arith.constant 0 : index
    %71 = vector.load %arg5[%c4, %c0_54, %c0_55] : memref<7x8x128xbf16, #tpu.memory_space<vmem>>, vector<1x8x128xbf16>
    %72 = vector.shape_cast %71 : vector<1x8x128xbf16> to vector<8x128xbf16>
    %c4_56 = arith.constant 4 : index
    %c0_57 = arith.constant 0 : index
    %c0_58 = arith.constant 0 : index
    %73 = vector.load %arg1[%c4_56, %c0_57, %c0_58] : memref<7x2x56xbf16, #tpu.memory_space<vmem>>, vector<1x2x56xbf16>
    %74 = vector.shape_cast %73 : vector<1x2x56xbf16> to vector<2x56xbf16>
    %cst_59 = arith.constant dense<0.000000e+00> : vector<2x8xf32>
    %75 = tpu.matmul %74, %3, %cst_59 {dimension_numbers = #tpu.dot_dimension_numbers<[1], [0], [0], [1], [0, 0, 1, 1], [], []>} : vector<2x56xbf16>, vector<56x8xbf16>, vector<2x8xf32> -> vector<2x8xf32>
    %76 = vector.broadcast %4 : vector<1x8xf32> to vector<2x8xf32>
    %77 = arith.addf %75, %76 : vector<2x8xf32>
    %cst_60 = arith.constant 0.000000e+00 : f32
    %78 = vector.broadcast %cst_60 : f32 to vector<2x8xf32>
    %79 = arith.maximumf %77, %78 : vector<2x8xf32>
    %80 = arith.truncf %79 : vector<2x8xf32> to vector<2x8xbf16>
    %cst_61 = arith.constant dense<0.000000e+00> : vector<2x128xf32>
    %81 = tpu.matmul %80, %72, %cst_61 {dimension_numbers = #tpu.dot_dimension_numbers<[1], [0], [0], [1], [0, 0, 1, 1], [], []>} : vector<2x8xbf16>, vector<8x128xbf16>, vector<2x128xf32> -> vector<2x128xf32>
    %82 = arith.addf %66, %81 : vector<2x128xf32>
    %c4_62 = arith.constant 4 : index
    %c0_63 = arith.constant 0 : index
    %c0_64 = arith.constant 0 : index
    %83 = vector.load %arg2[%c4_62, %c0_63, %c0_64] : memref<7x2x8xbf16, #tpu.memory_space<vmem>>, vector<1x2x8xbf16>
    %84 = vector.shape_cast %83 : vector<1x2x8xbf16> to vector<2x8xbf16>
    %cst_65 = arith.constant dense<0.000000e+00> : vector<2x128xf32>
    %85 = tpu.matmul %84, %72, %cst_65 {dimension_numbers = #tpu.dot_dimension_numbers<[1], [0], [0], [1], [0, 0, 1, 1], [], []>} : vector<2x8xbf16>, vector<8x128xbf16>, vector<2x128xf32> -> vector<2x128xf32>
    %86 = arith.addf %70, %85 : vector<2x128xf32>
    %c5 = arith.constant 5 : index
    %c0_66 = arith.constant 0 : index
    %c0_67 = arith.constant 0 : index
    %87 = vector.load %arg5[%c5, %c0_66, %c0_67] : memref<7x8x128xbf16, #tpu.memory_space<vmem>>, vector<1x8x128xbf16>
    %88 = vector.shape_cast %87 : vector<1x8x128xbf16> to vector<8x128xbf16>
    %c5_68 = arith.constant 5 : index
    %c0_69 = arith.constant 0 : index
    %c0_70 = arith.constant 0 : index
    %89 = vector.load %arg1[%c5_68, %c0_69, %c0_70] : memref<7x2x56xbf16, #tpu.memory_space<vmem>>, vector<1x2x56xbf16>
    %90 = vector.shape_cast %89 : vector<1x2x56xbf16> to vector<2x56xbf16>
    %cst_71 = arith.constant dense<0.000000e+00> : vector<2x8xf32>
    %91 = tpu.matmul %90, %3, %cst_71 {dimension_numbers = #tpu.dot_dimension_numbers<[1], [0], [0], [1], [0, 0, 1, 1], [], []>} : vector<2x56xbf16>, vector<56x8xbf16>, vector<2x8xf32> -> vector<2x8xf32>
    %92 = vector.broadcast %4 : vector<1x8xf32> to vector<2x8xf32>
    %93 = arith.addf %91, %92 : vector<2x8xf32>
    %cst_72 = arith.constant 0.000000e+00 : f32
    %94 = vector.broadcast %cst_72 : f32 to vector<2x8xf32>
    %95 = arith.maximumf %93, %94 : vector<2x8xf32>
    %96 = arith.truncf %95 : vector<2x8xf32> to vector<2x8xbf16>
    %cst_73 = arith.constant dense<0.000000e+00> : vector<2x128xf32>
    %97 = tpu.matmul %96, %88, %cst_73 {dimension_numbers = #tpu.dot_dimension_numbers<[1], [0], [0], [1], [0, 0, 1, 1], [], []>} : vector<2x8xbf16>, vector<8x128xbf16>, vector<2x128xf32> -> vector<2x128xf32>
    %98 = arith.addf %82, %97 : vector<2x128xf32>
    %c5_74 = arith.constant 5 : index
    %c0_75 = arith.constant 0 : index
    %c0_76 = arith.constant 0 : index
    %99 = vector.load %arg2[%c5_74, %c0_75, %c0_76] : memref<7x2x8xbf16, #tpu.memory_space<vmem>>, vector<1x2x8xbf16>
    %100 = vector.shape_cast %99 : vector<1x2x8xbf16> to vector<2x8xbf16>
    %cst_77 = arith.constant dense<0.000000e+00> : vector<2x128xf32>
    %101 = tpu.matmul %100, %88, %cst_77 {dimension_numbers = #tpu.dot_dimension_numbers<[1], [0], [0], [1], [0, 0, 1, 1], [], []>} : vector<2x8xbf16>, vector<8x128xbf16>, vector<2x128xf32> -> vector<2x128xf32>
    %102 = arith.addf %86, %101 : vector<2x128xf32>
    %c6 = arith.constant 6 : index
    %c0_78 = arith.constant 0 : index
    %c0_79 = arith.constant 0 : index
    %103 = vector.load %arg5[%c6, %c0_78, %c0_79] : memref<7x8x128xbf16, #tpu.memory_space<vmem>>, vector<1x8x128xbf16>
    %104 = vector.shape_cast %103 : vector<1x8x128xbf16> to vector<8x128xbf16>
    %c6_80 = arith.constant 6 : index
    %c0_81 = arith.constant 0 : index
    %c0_82 = arith.constant 0 : index
    %105 = vector.load %arg1[%c6_80, %c0_81, %c0_82] : memref<7x2x56xbf16, #tpu.memory_space<vmem>>, vector<1x2x56xbf16>
    %106 = vector.shape_cast %105 : vector<1x2x56xbf16> to vector<2x56xbf16>
    %cst_83 = arith.constant dense<0.000000e+00> : vector<2x8xf32>
    %107 = tpu.matmul %106, %3, %cst_83 {dimension_numbers = #tpu.dot_dimension_numbers<[1], [0], [0], [1], [0, 0, 1, 1], [], []>} : vector<2x56xbf16>, vector<56x8xbf16>, vector<2x8xf32> -> vector<2x8xf32>
    %108 = vector.broadcast %4 : vector<1x8xf32> to vector<2x8xf32>
    %109 = arith.addf %107, %108 : vector<2x8xf32>
    %cst_84 = arith.constant 0.000000e+00 : f32
    %110 = vector.broadcast %cst_84 : f32 to vector<2x8xf32>
    %111 = arith.maximumf %109, %110 : vector<2x8xf32>
    %112 = arith.truncf %111 : vector<2x8xf32> to vector<2x8xbf16>
    %cst_85 = arith.constant dense<0.000000e+00> : vector<2x128xf32>
    %113 = tpu.matmul %112, %104, %cst_85 {dimension_numbers = #tpu.dot_dimension_numbers<[1], [0], [0], [1], [0, 0, 1, 1], [], []>} : vector<2x8xbf16>, vector<8x128xbf16>, vector<2x128xf32> -> vector<2x128xf32>
    %114 = arith.addf %98, %113 : vector<2x128xf32>
    %c6_86 = arith.constant 6 : index
    %c0_87 = arith.constant 0 : index
    %c0_88 = arith.constant 0 : index
    %115 = vector.load %arg2[%c6_86, %c0_87, %c0_88] : memref<7x2x8xbf16, #tpu.memory_space<vmem>>, vector<1x2x8xbf16>
    %116 = vector.shape_cast %115 : vector<1x2x8xbf16> to vector<2x8xbf16>
    %cst_89 = arith.constant dense<0.000000e+00> : vector<2x128xf32>
    %117 = tpu.matmul %116, %104, %cst_89 {dimension_numbers = #tpu.dot_dimension_numbers<[1], [0], [0], [1], [0, 0, 1, 1], [], []>} : vector<2x8xbf16>, vector<8x128xbf16>, vector<2x128xf32> -> vector<2x128xf32>
    %118 = arith.addf %102, %117 : vector<2x128xf32>
    %c0_90 = arith.constant 0 : index
    %c0_91 = arith.constant 0 : index
    %119 = vector.load %arg12[%c0_90, %c0_91] : memref<8x128xf32, #tpu.memory_space<vmem>>, vector<2x128xf32>
    %120 = arith.addf %119, %114 : vector<2x128xf32>
    %c0_92 = arith.constant 0 : index
    %c0_93 = arith.constant 0 : index
    %121 = vector.load %arg12[%c0_92, %c0_93] : memref<8x128xf32, #tpu.memory_space<vmem>>, vector<2x128xf32>
    tpu.vector_store %arg12[%c0_92, %c0_93], %120 {strides = array<i32>} : memref<8x128xf32, #tpu.memory_space<vmem>>, vector<2x128xf32>,
    %c2_94 = arith.constant 2 : index
    %c0_95 = arith.constant 0 : index
    %122 = vector.load %arg12[%c2_94, %c0_95] : memref<8x128xf32, #tpu.memory_space<vmem>>, vector<2x128xf32>
    %123 = arith.addf %122, %118 : vector<2x128xf32>
    %c2_96 = arith.constant 2 : index
    %c0_97 = arith.constant 0 : index
    %124 = vector.load %arg12[%c2_96, %c0_97] : memref<8x128xf32, #tpu.memory_space<vmem>>, vector<2x128xf32>
    tpu.vector_store %arg12[%c2_96, %c0_97], %123 {strides = array<i32>} : memref<8x128xf32, #tpu.memory_space<vmem>>, vector<2x128xf32>,
    %c6_i32 = arith.constant 6 : i32
    %125 = arith.cmpi eq, %arg0, %c6_i32 : i32
    %126 = arith.extui %125 : i1 to i32
    %c0_i32_98 = arith.constant 0 : i32
    %127 = arith.cmpi ne, %126, %c0_i32_98 : i32
    scf.if %127 {
      %c0_99 = arith.constant 0 : index
      %c0_100 = arith.constant 0 : index
      %128 = vector.load %arg12[%c0_99, %c0_100] : memref<8x128xf32, #tpu.memory_space<vmem>>, vector<8x128xf32>
      %c0_101 = arith.constant 0 : index
      %c0_102 = arith.constant 0 : index
      %129 = vector.load %arg6[%c0_101, %c0_102] : memref<1x128xf32, #tpu.memory_space<vmem>>, vector<1x128xf32>
      %130 = vector.broadcast %129 : vector<1x128xf32> to vector<8x128xf32>
      %131 = arith.addf %128, %130 : vector<8x128xf32>
      %cst_103 = arith.constant 0.000000e+00 : f32
      %132 = vector.broadcast %cst_103 : f32 to vector<8x128xf32>
      %133 = arith.maximumf %131, %132 : vector<8x128xf32>
      %134 = tpu.iota {dimensions = array<i32: 0>} : vector<8x1xi32>
      %c2_i32 = arith.constant 2 : i32
      %135 = vector.broadcast %c2_i32 : i32 to vector<8x1xi32>
      %136 = arith.cmpi slt, %134, %135 : vector<8x1xi32>
      %137 = vector.extract_strided_slice %133 {offsets = [0, 0], sizes = [8, 64], strides = [1, 1]} : vector<8x128xf32> to vector<8x64xf32>
      %138 = vector.extract_strided_slice %133 {offsets = [0, 64], sizes = [8, 64], strides = [1, 1]} : vector<8x128xf32> to vector<8x64xf32>
      %139 = vector.shape_cast %136 : vector<8x1xi1> to vector<8x1xi1>
      %140 = vector.broadcast %139 : vector<8x1xi1> to vector<8x64xi1>
      %141 = arith.select %140, %137, %138 : vector<8x64xi1>, vector<8x64xf32>
      %142 = arith.truncf %141 : vector<8x64xf32> to vector<8x64xbf16>
      %c0_104 = arith.constant 0 : index
      %c0_105 = arith.constant 0 : index
      %143 = vector.load %arg7[%c0_104, %c0_105] : memref<64x128xbf16, #tpu.memory_space<vmem>>, vector<64x128xbf16>
      %cst_106 = arith.constant dense<0.000000e+00> : vector<8x128xf32>
      %144 = tpu.matmul %142, %143, %cst_106 {dimension_numbers = #tpu.dot_dimension_numbers<[1], [0], [0], [1], [0, 0, 1, 1], [], []>} : vector<8x64xbf16>, vector<64x128xbf16>, vector<8x128xf32> -> vector<8x128xf32>
      %c0_107 = arith.constant 0 : index
      %c0_108 = arith.constant 0 : index
      %145 = vector.load %arg8[%c0_107, %c0_108] : memref<1x128xf32, #tpu.memory_space<vmem>>, vector<1x128xf32>
      %146 = vector.broadcast %145 : vector<1x128xf32> to vector<8x128xf32>
      %147 = arith.addf %144, %146 : vector<8x128xf32>
      %148 = vector.extract_strided_slice %147 {offsets = [0, 0], sizes = [8, 64], strides = [1, 1]} : vector<8x128xf32> to vector<8x64xf32>
      %cst_109 = arith.constant 0.000000e+00 : f32
      %149 = vector.broadcast %cst_109 : f32 to vector<8x64xf32>
      %150 = arith.maximumf %148, %149 : vector<8x64xf32>
      %151 = vector.extract_strided_slice %147 {offsets = [0, 64], sizes = [8, 64], strides = [1, 1]} : vector<8x128xf32> to vector<8x64xf32>
      %152 = vector.shape_cast %136 : vector<8x1xi1> to vector<8x1xi1>
      %153 = vector.broadcast %152 : vector<8x1xi1> to vector<8x64xi1>
      %154 = arith.select %153, %150, %151 : vector<8x64xi1>, vector<8x64xf32>
      %155 = arith.truncf %154 : vector<8x64xf32> to vector<8x64xbf16>
      %c0_110 = arith.constant 0 : index
      %c0_111 = arith.constant 0 : index
      %156 = vector.load %arg9[%c0_110, %c0_111] : memref<64x128xbf16, #tpu.memory_space<vmem>>, vector<64x128xbf16>
      %cst_112 = arith.constant dense<0.000000e+00> : vector<8x128xf32>
      %157 = tpu.matmul %155, %156, %cst_112 {dimension_numbers = #tpu.dot_dimension_numbers<[1], [0], [0], [1], [0, 0, 1, 1], [], []>} : vector<8x64xbf16>, vector<64x128xbf16>, vector<8x128xf32> -> vector<8x128xf32>
      %c0_113 = arith.constant 0 : index
      %c0_114 = arith.constant 0 : index
      %158 = vector.load %arg10[%c0_113, %c0_114] : memref<1x128xf32, #tpu.memory_space<vmem>>, vector<1x128xf32>
      %159 = vector.broadcast %158 : vector<1x128xf32> to vector<8x128xf32>
      %160 = arith.addf %157, %159 : vector<8x128xf32>
      %c0_115 = arith.constant 0 : index
      %c0_116 = arith.constant 0 : index
      %161 = vector.load %arg11[%c0_115, %c0_116] : memref<8x128xf32, #tpu.memory_space<vmem>>, vector<8x128xf32>
      tpu.vector_store %arg11[%c0_115, %c0_116], %160 {strides = array<i32>} : memref<8x128xf32, #tpu.memory_space<vmem>>, vector<8x128xf32>,
    } else {
    }
    return
  }
  func.func @transform_0(%arg0: i32) -> (i32, i32, i32) {
    %c0_i32 = arith.constant 0 : i32
    %c0_i32_0 = arith.constant 0 : i32
    %c0_i32_1 = arith.constant 0 : i32
    return %arg0, %c0_i32, %c0_i32_0 : i32, i32, i32
  }
  func.func @transform_1(%arg0: i32) -> (i32, i32, i32) {
    %c0_i32 = arith.constant 0 : i32
    %c0_i32_0 = arith.constant 0 : i32
    %c0_i32_1 = arith.constant 0 : i32
    return %arg0, %c0_i32, %c0_i32_0 : i32, i32, i32
  }
  func.func @transform_2(%arg0: i32) -> (i32, i32) {
    %c0_i32 = arith.constant 0 : i32
    %c0_i32_0 = arith.constant 0 : i32
    %c0_i32_1 = arith.constant 0 : i32
    return %c0_i32, %c0_i32_0 : i32, i32
  }
  func.func @transform_3(%arg0: i32) -> (i32, i32) {
    %c0_i32 = arith.constant 0 : i32
    %c0_i32_0 = arith.constant 0 : i32
    %c0_i32_1 = arith.constant 0 : i32
    return %c0_i32, %c0_i32_0 : i32, i32
  }
  func.func @transform_4(%arg0: i32) -> (i32, i32, i32) {
    %c0_i32 = arith.constant 0 : i32
    %c0_i32_0 = arith.constant 0 : i32
    %c0_i32_1 = arith.constant 0 : i32
    return %arg0, %c0_i32, %c0_i32_0 : i32, i32, i32
  }
  func.func @transform_5(%arg0: i32) -> (i32, i32) {
    %c0_i32 = arith.constant 0 : i32
    %c0_i32_0 = arith.constant 0 : i32
    %c0_i32_1 = arith.constant 0 : i32
    return %c0_i32, %c0_i32_0 : i32, i32
  }
  func.func @transform_6(%arg0: i32) -> (i32, i32) {
    %c0_i32 = arith.constant 0 : i32
    %c0_i32_0 = arith.constant 0 : i32
    %c0_i32_1 = arith.constant 0 : i32
    return %c0_i32, %c0_i32_0 : i32, i32
  }
  func.func @transform_7(%arg0: i32) -> (i32, i32) {
    %c0_i32 = arith.constant 0 : i32
    %c0_i32_0 = arith.constant 0 : i32
    %c0_i32_1 = arith.constant 0 : i32
    return %c0_i32, %c0_i32_0 : i32, i32
  }
  func.func @transform_8(%arg0: i32) -> (i32, i32) {
    %c0_i32 = arith.constant 0 : i32
    %c0_i32_0 = arith.constant 0 : i32
    %c0_i32_1 = arith.constant 0 : i32
    return %c0_i32, %c0_i32_0 : i32, i32
  }
  func.func @transform_9(%arg0: i32) -> (i32, i32) {
    %c0_i32 = arith.constant 0 : i32
    %c0_i32_0 = arith.constant 0 : i32
    %c0_i32_1 = arith.constant 0 : i32
    return %c0_i32, %c0_i32_0 : i32, i32
  }
  func.func @transform_10(%arg0: i32) -> (i32, i32) {
    %c0_i32 = arith.constant 0 : i32
    %c0_i32_0 = arith.constant 0 : i32
    %c0_i32_1 = arith.constant 0 : i32
    return %c0_i32, %c0_i32_0 : i32, i32
  }
}

</mosaic_0001>

<llo_original>
// kernel: polishnet_forward.1
$region0: #{polishnet_forward.1}
  #allocation0 [shape = 'u32[]', space=smem, size = 0x4, offset = 0x4, fixed_abs, tag = 'smem constant byte address 0x4 - core index']
  #allocation1 [shape = 'u32[144,128]{1,0:T(1,128)}', space=vmem, size = 0x12000, scoped, tag = 'internal scratch']
  #allocation2 [shape = 'f32[8,128]{1,0:T(8,128)}', space=vmem, size = 0x1000, scoped, tag = 'scratch operand']
  %s0 = inlined_call_operand.vmem [shape: bf16[49,2,56], index: 0, kind: input, shape index: {}]
  %s1 = inlined_call_operand.vmem [shape: bf16[49,2,8], index: 1, kind: input, shape index: {}]
  %s2 = inlined_call_operand.vmem [shape: bf16[56,8], index: 2, kind: input, shape index: {}]
  %s3 = inlined_call_operand.vmem [shape: f32[1,8], index: 3, kind: input, shape index: {}]
  %s4 = inlined_call_operand.vmem [shape: bf16[49,8,128], index: 4, kind: input, shape index: {}]
  %s5 = inlined_call_operand.vmem [shape: f32[1,128], index: 5, kind: input, shape index: {}]
  %s6 = inlined_call_operand.vmem [shape: bf16[64,128], index: 6, kind: input, shape index: {}]
  %s7 = inlined_call_operand.vmem [shape: f32[1,128], index: 7, kind: input, shape index: {}]
  %s8 = inlined_call_operand.vmem [shape: bf16[64,128], index: 8, kind: input, shape index: {}]
  %s9 = inlined_call_operand.vmem [shape: f32[1,128], index: 9, kind: input, shape index: {}]
  %s10 = inlined_call_operand.vmem [shape: f32[8,128], index: 10, kind: output, shape index: {}]
  %s11 = sld [smem:[#allocation0]]
  $region81: #{polishnet_forward.1} parent=0
    _
  %s13 = ssub.s32 1, %s11
  %s14 = scalar_select 0, %s13, %s11
  loop: start=0, step=1, limit=9
  $region2: #{polishnet_forward.1} parent=0 // loop_pre_header
    _
  $region3: #{polishnet_forward.1} parent=0 // loop_header
    %s16 = sphi 0, %s20
    %p17 = scmp.ge.s32.totalorder %s16, 9
    %s26 = sphi 0, %s28
    %s29 = sphi 0, %s26
    %s30 = sphi 0, %s29
    %s46 = sphi 0, %s30
    %s52 = sphi 0, %s54
    %s55 = sphi 0, %s52
    %s56 = sphi 0, %s55
    %s72 = sphi 0, %s56
    %s76 = sphi 0, %s76
    %s78 = sphi 0, %s76
    %s79 = sphi 0, %s78
    %s93 = sphi 0, %s79
    %s97 = sphi 0, %s97
    %s99 = sphi 0, %s97
    %s100 = sphi 0, %s99
    %s114 = sphi 0, %s100
    %s120 = sphi 0, %s122
    %s123 = sphi 0, %s120
    %s124 = sphi 0, %s123
    %s140 = sphi 0, %s124
    %s144 = sphi 0, %s144
    %s146 = sphi 0, %s144
    %s147 = sphi 0, %s146
    %s161 = sphi 0, %s147
    %s165 = sphi 0, %s165
    %s167 = sphi 0, %s165
    %s168 = sphi 0, %s167
    %s182 = sphi 0, %s168
    %s186 = sphi 0, %s186
    %s188 = sphi 0, %s186
    %s189 = sphi 0, %s188
    %s203 = sphi 0, %s189
    %s207 = sphi 0, %s207
    %s209 = sphi 0, %s207
    %s210 = sphi 0, %s209
    %s224 = sphi 0, %s210
    %s228 = sphi 0, %s228
    %s230 = sphi 0, %s228
    %s231 = sphi 0, %s230
    %s245 = sphi 0, %s231
    %s249 = sphi 0, %s249
    %s251 = sphi 0, %s249
    %s252 = sphi 0, %s251
    %s266 = sphi 0, %s252
  $region4: #{polishnet_forward.1} parent=0 // loop_header_branch
    %19 = sbr.rel (%p17) target = $region8
  $region5: #{polishnet_forward.1} parent=0 // loop_body
    %s21 = ssub.s32 %s16, 1
    %s22 = ssub.s32 %s16, 2
    %s23 = sadd.s32 %s16, 1
    %s24 = ssub.s32 %s16, %s23
    %p25 = scmp.eq.s32.totalorder %s24, 0
    %s27 = sadd.s32 %s26, 1
    %s28 = scalar_select %p25, %s26, %s27
    %p31 = pneg %p25
    %p32 = scmp.eq.s32.totalorder %s16, 6
    %p33 = por %p31, %p32
    %p34 = scmp.ne.s32.totalorder %s26, %s29
    %p35 = scmp.eq.s32.totalorder %s16, 0
    %p36 = por %p34, %p35
    %p37 = scmp.ne.s32.totalorder %s26, %s29
    %p38 = scmp.eq.s32.totalorder %s21, 6
    %p39 = por %p37, %p38
    %p40 = scmp.ne.s32.totalorder %s29, %s30
    %p41 = scmp.eq.s32.totalorder %s21, 0
    %p42 = por %p40, %p41
    %p43 = scmp.ne.s32.totalorder %s29, %s30
    %p44 = scmp.eq.s32.totalorder %s22, 6
    %p45 = por %p43, %p44
    %p47 = scmp.ne.s32.totalorder %s30, %s46
    %p48 = scmp.eq.s32.totalorder %s22, 0
    %p49 = por %p47, %p48
    %s50 = ssub.s32 %s16, %s23
    %p51 = scmp.eq.s32.totalorder %s50, 0
    %s53 = sadd.s32 %s52, 1
    %s54 = scalar_select %p51, %s52, %s53
    %p57 = pneg %p51
    %p58 = scmp.eq.s32.totalorder %s16, 6
    %p59 = por %p57, %p58
    %p60 = scmp.ne.s32.totalorder %s52, %s55
    %p61 = scmp.eq.s32.totalorder %s16, 0
    %p62 = por %p60, %p61
    %p63 = scmp.ne.s32.totalorder %s52, %s55
    %p64 = scmp.eq.s32.totalorder %s21, 6
    %p65 = por %p63, %p64
    %p66 = scmp.ne.s32.totalorder %s55, %s56
    %p67 = scmp.eq.s32.totalorder %s21, 0
    %p68 = por %p66, %p67
    %p69 = scmp.ne.s32.totalorder %s55, %s56
    %p70 = scmp.eq.s32.totalorder %s22, 6
    %p71 = por %p69, %p70
    %p73 = scmp.ne.s32.totalorder %s56, %s72
    %p74 = scmp.eq.s32.totalorder %s22, 0
    %p75 = por %p73, %p74
    %s77 = sadd.s32 %s76, 1
    %p80 = scmp.eq.s32.totalorder %s16, 6
    %p81 = scmp.ne.s32.totalorder %s76, %s78
    %p82 = scmp.eq.s32.totalorder %s16, 0
    %p83 = por %p81, %p82
    %p84 = scmp.ne.s32.totalorder %s76, %s78
    %p85 = scmp.eq.s32.totalorder %s21, 6
    %p86 = por %p84, %p85
    %p87 = scmp.ne.s32.totalorder %s78, %s79
    %p88 = scmp.eq.s32.totalorder %s21, 0
    %p89 = por %p87, %p88
    %p90 = scmp.ne.s32.totalorder %s78, %s79
    %p91 = scmp.eq.s32.totalorder %s22, 6
    %p92 = por %p90, %p91
    %p94 = scmp.ne.s32.totalorder %s79, %s93
    %p95 = scmp.eq.s32.totalorder %s22, 0
    %p96 = por %p94, %p95
    %s98 = sadd.s32 %s97, 1
    %p101 = scmp.eq.s32.totalorder %s16, 6
    %p102 = scmp.ne.s32.totalorder %s97, %s99
    %p103 = scmp.eq.s32.totalorder %s16, 0
    %p104 = por %p102, %p103
    %p105 = scmp.ne.s32.totalorder %s97, %s99
    %p106 = scmp.eq.s32.totalorder %s21, 6
    %p107 = por %p105, %p106
    %p108 = scmp.ne.s32.totalorder %s99, %s100
    %p109 = scmp.eq.s32.totalorder %s21, 0
    %p110 = por %p108, %p109
    %p111 = scmp.ne.s32.totalorder %s99, %s100
    %p112 = scmp.eq.s32.totalorder %s22, 6
    %p113 = por %p111, %p112
    %p115 = scmp.ne.s32.totalorder %s100, %s114
    %p116 = scmp.eq.s32.totalorder %s22, 0
    %p117 = por %p115, %p116
    %s118 = ssub.s32 %s16, %s23
    %p119 = scmp.eq.s32.totalorder %s118, 0
    %s121 = sadd.s32 %s120, 1
    %s122 = scalar_select %p119, %s120, %s121
    %p125 = pneg %p119
    %p126 = scmp.eq.s32.totalorder %s16, 6
    %p127 = por %p125, %p126
    %p128 = scmp.ne.s32.totalorder %s120, %s123
    %p129 = scmp.eq.s32.totalorder %s16, 0
    %p130 = por %p128, %p129
    %p131 = scmp.ne.s32.totalorder %s120, %s123
    %p132 = scmp.eq.s32.totalorder %s21, 6
    %p133 = por %p131, %p132
    %p134 = scmp.ne.s32.totalorder %s123, %s124
    %p135 = scmp.eq.s32.totalorder %s21, 0
    %p136 = por %p134, %p135
    %p137 = scmp.ne.s32.totalorder %s123, %s124
    %p138 = scmp.eq.s32.totalorder %s22, 6
    %p139 = por %p137, %p138
    %p141 = scmp.ne.s32.totalorder %s124, %s140
    %p142 = scmp.eq.s32.totalorder %s22, 0
    %p143 = por %p141, %p142
    %s145 = sadd.s32 %s144, 1
    %p148 = scmp.eq.s32.totalorder %s16, 6
    %p149 = scmp.ne.s32.totalorder %s144, %s146
    %p150 = scmp.eq.s32.totalorder %s16, 0
    %p151 = por %p149, %p150
    %p152 = scmp.ne.s32.totalorder %s144, %s146
    %p153 = scmp.eq.s32.totalorder %s21, 6
    %p154 = por %p152, %p153
    %p155 = scmp.ne.s32.totalorder %s146, %s147
    %p156 = scmp.eq.s32.totalorder %s21, 0
    %p157 = por %p155, %p156
    %p158 = scmp.ne.s32.totalorder %s146, %s147
    %p159 = scmp.eq.s32.totalorder %s22, 6
    %p160 = por %p158, %p159
    %p162 = scmp.ne.s32.totalorder %s147, %s161
    %p163 = scmp.eq.s32.totalorder %s22, 0
    %p164 = por %p162, %p163
    %s166 = sadd.s32 %s165, 1
    %p169 = scmp.eq.s32.totalorder %s16, 6
    %p170 = scmp.ne.s32.totalorder %s165, %s167
    %p171 = scmp.eq.s32.totalorder %s16, 0
    %p172 = por %p170, %p171
    %p173 = scmp.ne.s32.totalorder %s165, %s167
    %p174 = scmp.eq.s32.totalorder %s21, 6
    %p175 = por %p173, %p174
    %p176 = scmp.ne.s32.totalorder %s167, %s168
    %p177 = scmp.eq.s32.totalorder %s21, 0
    %p178 = por %p176, %p177
    %p179 = scmp.ne.s32.totalorder %s167, %s168
    %p180 = scmp.eq.s32.totalorder %s22, 6
    %p181 = por %p179, %p180
    %p183 = scmp.ne.s32.totalorder %s168, %s182
    %p184 = scmp.eq.s32.totalorder %s22, 0
    %p185 = por %p183, %p184
    %s187 = sadd.s32 %s186, 1
    %p190 = scmp.eq.s32.totalorder %s16, 6
    %p191 = scmp.ne.s32.totalorder %s186, %s188
    %p192 = scmp.eq.s32.totalorder %s16, 0
    %p193 = por %p191, %p192
    %p194 = scmp.ne.s32.totalorder %s186, %s188
    %p195 = scmp.eq.s32.totalorder %s21, 6
    %p196 = por %p194, %p195
    %p197 = scmp.ne.s32.totalorder %s188, %s189
    %p198 = scmp.eq.s32.totalorder %s21, 0
    %p199 = por %p197, %p198
    %p200 = scmp.ne.s32.totalorder %s188, %s189
    %p201 = scmp.eq.s32.totalorder %s22, 6
    %p202 = por %p200, %p201
    %p204 = scmp.ne.s32.totalorder %s189, %s203
    %p205 = scmp.eq.s32.totalorder %s22, 0
    %p206 = por %p204, %p205
    %s208 = sadd.s32 %s207, 1
    %p211 = scmp.eq.s32.totalorder %s16, 6
    %p212 = scmp.ne.s32.totalorder %s207, %s209
    %p213 = scmp.eq.s32.totalorder %s16, 0
    %p214 = por %p212, %p213
    %p215 = scmp.ne.s32.totalorder %s207, %s209
    %p216 = scmp.eq.s32.totalorder %s21, 6
    %p217 = por %p215, %p216
    %p218 = scmp.ne.s32.totalorder %s209, %s210
    %p219 = scmp.eq.s32.totalorder %s21, 0
    %p220 = por %p218, %p219
    %p221 = scmp.ne.s32.totalorder %s209, %s210
    %p222 = scmp.eq.s32.totalorder %s22, 6
    %p223 = por %p221, %p222
    %p225 = scmp.ne.s32.totalorder %s210, %s224
    %p226 = scmp.eq.s32.totalorder %s22, 0
    %p227 = por %p225, %p226
    %s229 = sadd.s32 %s228, 1
    %p232 = scmp.eq.s32.totalorder %s16, 6
    %p233 = scmp.ne.s32.totalorder %s228, %s230
    %p234 = scmp.eq.s32.totalorder %s16, 0
    %p235 = por %p233, %p234
    %p236 = scmp.ne.s32.totalorder %s228, %s230
    %p237 = scmp.eq.s32.totalorder %s21, 6
    %p238 = por %p236, %p237
    %p239 = scmp.ne.s32.totalorder %s230, %s231
    %p240 = scmp.eq.s32.totalorder %s21, 0
    %p241 = por %p239, %p240
    %p242 = scmp.ne.s32.totalorder %s230, %s231
    %p243 = scmp.eq.s32.totalorder %s22, 6
    %p244 = por %p242, %p243
    %p246 = scmp.ne.s32.totalorder %s231, %s245
    %p247 = scmp.eq.s32.totalorder %s22, 0
    %p248 = por %p246, %p247
    %s250 = sadd.s32 %s249, 1
    %p253 = scmp.eq.s32.totalorder %s16, 6
    %p254 = scmp.ne.s32.totalorder %s249, %s251
    %p255 = scmp.eq.s32.totalorder %s16, 0
    %p256 = por %p254, %p255
    %p257 = scmp.ne.s32.totalorder %s249, %s251
    %p258 = scmp.eq.s32.totalorder %s21, 6
    %p259 = por %p257, %p258
    %p260 = scmp.ne.s32.totalorder %s251, %s252
    %p261 = scmp.eq.s32.totalorder %s21, 0
    %p262 = por %p260, %p261
    %p263 = scmp.ne.s32.totalorder %s251, %s252
    %p264 = scmp.eq.s32.totalorder %s22, 6
    %p265 = por %p263, %p264
    %p267 = scmp.ne.s32.totalorder %s252, %s266
    %p268 = scmp.eq.s32.totalorder %s22, 0
    %p269 = por %p267, %p268
    %p270 = scmp.le.s32.totalorder 1, %s16
    %p271 = scmp.lt.s32.totalorder %s16, 8
    %p272 = pnand %p270, %p271
    %p273 = pneg %p272
    // Predicated region
    $region9: #{polishnet_forward.1} parent=5 // pred_check
      _
    $region10: #{polishnet_forward.1} parent=5 // pred_check_branch
      %275 = sbr.rel (%p272) target = $region12
    $region11: #{polishnet_forward.1} parent=5 // pred_region
      %s276 = ssub.s32 %s16, 1
      // Predicated region
      $region13: #{polishnet_forward.1} parent=11 // pred_check
        %p277 = pneg %p89
      $region14: #{polishnet_forward.1} parent=11 // pred_check_branch
        %279 = sbr.rel (%p277) target = $region16
      $region15: #{polishnet_forward.1} parent=11 // pred_region
        _
      $region16: #{polishnet_forward.1} parent=11 // pred_fallthru
        _
      // Predicated region
      $region17: #{polishnet_forward.1} parent=11 // pred_check
        %p280 = pneg %p110
      $region18: #{polishnet_forward.1} parent=11 // pred_check_branch
        %282 = sbr.rel (%p280) target = $region20
      $region19: #{polishnet_forward.1} parent=11 // pred_region
        _
      $region20: #{polishnet_forward.1} parent=11 // pred_fallthru
        _
      // Predicated region
      $region21: #{polishnet_forward.1} parent=11 // pred_check
        %p283 = pneg %p157
      $region22: #{polishnet_forward.1} parent=11 // pred_check_branch
        %285 = sbr.rel (%p283) target = $region24
      $region23: #{polishnet_forward.1} parent=11 // pred_region
        _
      $region24: #{polishnet_forward.1} parent=11 // pred_fallthru
        _
      // Predicated region
      $region25: #{polishnet_forward.1} parent=11 // pred_check
        %p286 = pneg %p178
      $region26: #{polishnet_forward.1} parent=11 // pred_check_branch
        %288 = sbr.rel (%p286) target = $region28
      $region27: #{polishnet_forward.1} parent=11 // pred_region
        _
      $region28: #{polishnet_forward.1} parent=11 // pred_fallthru
        _
      // Predicated region
      $region29: #{polishnet_forward.1} parent=11 // pred_check
        %p289 = pneg %p199
      $region30: #{polishnet_forward.1} parent=11 // pred_check_branch
        %291 = sbr.rel (%p289) target = $region32
      $region31: #{polishnet_forward.1} parent=11 // pred_region
        _
      $region32: #{polishnet_forward.1} parent=11 // pred_fallthru
        _
      // Predicated region
      $region33: #{polishnet_forward.1} parent=11 // pred_check
        %p292 = pneg %p220
      $region34: #{polishnet_forward.1} parent=11 // pred_check_branch
        %294 = sbr.rel (%p292) target = $region36
      $region35: #{polishnet_forward.1} parent=11 // pred_region
        _
      $region36: #{polishnet_forward.1} parent=11 // pred_fallthru
        _
      // Predicated region
      $region37: #{polishnet_forward.1} parent=11 // pred_check
        %p295 = pneg %p241
      $region38: #{polishnet_forward.1} parent=11 // pred_check_branch
        %297 = sbr.rel (%p295) target = $region40
      $region39: #{polishnet_forward.1} parent=11 // pred_region
        _
      $region40: #{polishnet_forward.1} parent=11 // pred_fallthru
        _
    $region12: #{polishnet_forward.1} parent=5 // pred_fallthru
      _
    %p298 = scmp.lt.s32.totalorder %s16, 7
    // Predicated region
    $region41: #{polishnet_forward.1} parent=5 // pred_check
      %p299 = pneg %p298
    $region42: #{polishnet_forward.1} parent=5 // pred_check_branch
      %301 = sbr.rel (%p299) target = $region44
    $region43: #{polishnet_forward.1} parent=5 // pred_region
      // Predicated region
      $region45: #{polishnet_forward.1} parent=43 // pred_check
        %p302 = pneg %p36
      $region46: #{polishnet_forward.1} parent=43 // pred_check_branch
        %304 = sbr.rel (%p302) target = $region48
      $region47: #{polishnet_forward.1} parent=43 // pred_region
        %s305 = smul.u32 7, %s16
        %p306 = scmp.lt.s32.totalorder %s305, 48
        %s307 = scalar_select %p306, %s305, 48
        %s308 = scalar_lea.vmem %s0, %s307
        %s309 = smul.u32 7, %s16
      $region48: #{polishnet_forward.1} parent=43 // pred_fallthru
        _
      // Predicated region
      $region49: #{polishnet_forward.1} parent=43 // pred_check
        %p310 = pneg %p62
      $region50: #{polishnet_forward.1} parent=43 // pred_check_branch
        %312 = sbr.rel (%p310) target = $region52
      $region51: #{polishnet_forward.1} parent=43 // pred_region
        %s313 = smul.u32 7, %s16
        %p314 = scmp.lt.s32.totalorder %s313, 48
        %s315 = scalar_select %p314, %s313, 48
        %s316 = scalar_lea.vmem %s1, %s315
        %s317 = smul.u32 7, %s16
      $region52: #{polishnet_forward.1} parent=43 // pred_fallthru
        _
      // Predicated region
      $region53: #{polishnet_forward.1} parent=43 // pred_check
        %p318 = pneg %p130
      $region54: #{polishnet_forward.1} parent=43 // pred_check_branch
        %320 = sbr.rel (%p318) target = $region56
      $region55: #{polishnet_forward.1} parent=43 // pred_region
        %s321 = smul.u32 7, %s16
        %p322 = scmp.lt.s32.totalorder %s321, 48
        %s323 = scalar_select %p322, %s321, 48
        %s324 = smul.addr %s323, 4
        %s325 = scalar_lea.vmem %s4, %s324
        %s326 = smul.u32 7, %s16
      $region56: #{polishnet_forward.1} parent=43 // pred_fallthru
        _
    $region44: #{polishnet_forward.1} parent=5 // pred_fallthru
      _
    %p327 = scmp.le.s32.totalorder 1, %s16
    %p328 = scmp.lt.s32.totalorder %s16, 8
    %p329 = pnand %p327, %p328
    %p330 = pneg %p329
    // Predicated region
    $region57: #{polishnet_forward.1} parent=5 // pred_check
      _
    $region58: #{polishnet_forward.1} parent=5 // pred_check_branch
      %332 = sbr.rel (%p329) target = $region60
    $region59: #{polishnet_forward.1} parent=5 // pred_region
      %s333 = ssub.s32 %s16, 1
      %s334 = smul.u32 7, %s21
      %p335 = scmp.lt.s32.totalorder %s334, 48
      %s336 = scalar_select %p335, %s334, 48
      %s337 = scalar_lea.vmem %s0, %s336
      %p338 = pneg %p42
      %p339 = pneg %p39
      %s340 = smul.u32 7, %s21
      %p341 = scmp.lt.s32.totalorder %s340, 48
      %s342 = scalar_select %p341, %s340, 48
      %s343 = scalar_lea.vmem %s1, %s342
      %p344 = pneg %p68
      %p345 = pneg %p65
      %p346 = pneg %p89
      %p347 = pneg %p86
      %p348 = pneg %p110
      %p349 = pneg %p107
      %s350 = smul.u32 7, %s21
      %p351 = scmp.lt.s32.totalorder %s350, 48
      %s352 = scalar_select %p351, %s350, 48
      %s353 = smul.addr %s352, 4
      %s354 = scalar_lea.vmem %s4, %s353
      %p355 = pneg %p136
      %p356 = pneg %p133
      %p357 = pneg %p157
      %p358 = pneg %p154
      %p359 = pneg %p178
      %p360 = pneg %p175
      %p361 = pneg %p199
      %p362 = pneg %p196
      %p363 = pneg %p220
      %p364 = pneg %p217
      %p365 = pneg %p241
      %p366 = pneg %p238
      %p367 = pneg %p262
      %p368 = pneg %p259
      %s369 = smul.u32 7, %s21
      %p370 = scmp.lt.s32.totalorder %s369, 48
      %s371 = scalar_select %p370, %s369, 48
      %s372 = scalar_lea.vmem %s0, %s371
      %s373 = smul.u32 7, %s21
      %s374 = smul.u32 7, %s21
      %p375 = scmp.lt.s32.totalorder %s374, 48
      %s376 = scalar_select %p375, %s374, 48
      %s377 = scalar_lea.vmem %s1, %s376
      %s378 = smul.u32 7, %s21
      %s379 = smul.u32 7, %s21
      %p380 = scmp.lt.s32.totalorder %s379, 48
      %s381 = scalar_select %p380, %s379, 48
      %s382 = smul.addr %s381, 4
      %s383 = scalar_lea.vmem %s4, %s382
      %s384 = smul.u32 7, %s21
      %p386 = scmp.eq.s32.totalorder %s21, 0
      // Predicated region
      $region61: #{polishnet_forward.1} parent=59 // pred_check
        %p387 = pneg %p386
      $region62: #{polishnet_forward.1} parent=59 // pred_check_branch
        %389 = sbr.rel (%p387) target = $region64
      $region63: #{polishnet_forward.1} parent=59 // pred_region
        %390 = vst [vmem:[#allocation2] sm:$0xff] 0.0
      $region64: #{polishnet_forward.1} parent=59 // pred_fallthru
        _
      %v391 = vld [vmem:[%s2] sm:$0xf]
      %v392 = vld [vmem:[%s2 + $0x4] sm:$0xf]
      %v393 = vld [vmem:[%s2 + $0x8] sm:$0xf]
      %v394 = vld [vmem:[%s2 + $0xc] sm:$0xf]
      %v395 = vld [vmem:[%s2 + $0x10] sm:$0xf]
      %v396 = vld [vmem:[%s2 + $0x14] sm:$0xf]
      %v397 = vld [vmem:[%s2 + $0x18] sm:$0xf]
      %v398 = vld [vmem:[%s3] sm:$0x1]
      %v399 = vld [vmem:[%s383] sm:$0xf]
      %v400 = vld [vmem:[%s372] sm:$0x1]
      %v402 = vlaneseq
      %v403 = vshrl.u32 %v402, 7
      %v404 = vsub.s32 0, %v403
      %v405 = vrot.slane %v398, %v404
      %v414 = vunpack.c.l.b16 %v391
      %v415 = vunpack.c.l.b16 %v392
      %v416 = vunpack.c.l.b16 %v393
      %v417 = vunpack.c.l.b16 %v394
      %v418 = vunpack.c.l.b16 %v395
      %v419 = vunpack.c.l.b16 %v396
      %v420 = vunpack.c.l.b16 %v397
      %v421 = vpack.c.b16 %v415, %v414
      %v422 = vpack.c.b16 %v417, %v416
      %v423 = vpack.c.b16 %v419, %v418
      %v424 = vpack.c.b16 %v420, %v420
      %vm428 = vcmask 457728
      %v430 = vsel %vm428, %v400, 0
      %vm432 = vcmask 1043456
      %v434 = vsel %vm432, %v424, 0
      %436 = vmatprep.subr.bf16.mxu0 0
      %437 = vmatpush1.bf16.msra.mxu0 %v421
      %438 = vmatprep.subr.bf16.mxu0 0
      %439 = vmatpush1.bf16.msra.mxu0 %v422
      %440 = vmatprep.subr.bf16.mxu0 0
      %441 = vmatpush1.bf16.msra.mxu0 %v423
      %442 = vmatprep.subr.bf16.mxu0 0
      %443 = vmatpush1.bf16.msra.mxu0 %v434
      %444 = vmatprep.subr.bf16.mxu0 0
      %445 = vmatpush1.bf16.msra.mxu0 0
      %446 = vmatprep.subr.bf16.mxu0 0
      %447 = vmatpush1.bf16.msra.mxu0 0
      %448 = vmatprep.subr.bf16.mxu0 0
      %449 = vmatpush1.bf16.msra.mxu0 0
      %450 = vmatprep.subr.bf16.mxu0 0
      %451 = vmatpush1.bf16.msra.mxu0 0
      %452 = vmatprep.subr.bf16.mxu0 0
      %453 = vmatpush1.bf16.msra.mxu0 0
      %454 = vmatprep.subr.bf16.mxu0 0
      %455 = vmatpush1.bf16.msra.mxu0 0
      %456 = vmatprep.subr.bf16.mxu0 0
      %457 = vmatpush1.bf16.msra.mxu0 0
      %458 = vmatprep.subr.bf16.mxu0 0
      %459 = vmatpush1.bf16.msra.mxu0 0
      %460 = vmatprep.subr.bf16.mxu0 0
      %461 = vmatpush1.bf16.msra.mxu0 0
      %462 = vmatprep.subr.bf16.mxu0 0
      %463 = vmatpush1.bf16.msra.mxu0 0
      %464 = vmatprep.subr.bf16.mxu0 0
      %465 = vmatpush1.bf16.msra.mxu0 0
      %466 = vmatprep.subr.bf16.mxu0 0
      %467 = vmatpush1.bf16.msra.mxu0 0
      %468 = vmatprep.mubr.bf16.mxu0 0
      %469 = vmatmul.mubr.bf16.gmra.mrb[0].mxu0 %v430
      %v470 = vpop.f32.mrb[0].mxu0
      %v471 = vadd.f32 %v405, %v470
      %v472 = vpop.f32.mrb[0].mxu0
      %v473 = vpop.f32.mrb[0].mxu0
      %v474 = vpop.f32.mrb[0].mxu0
      %475 = vdwg.mxu0
      %v476 = vmax.f32 %v471, 0.0
      %v477 = vpack.c.bf16 %v476, %v476
      %v478 = vld [vmem:[%s377] sm:$0x1]
      %s479 = scalar_lea.vmem %s383, 4
      %v480 = vld [vmem:[%s479] sm:$0xf]
      %s481 = scalar_lea.vmem %s372, 1
      %v482 = vld [vmem:[%s481] sm:$0x1]
      %v484 = vsel %vm428, %v482, 0
      %486 = vmatprep.subr.bf16.mxu0 0
      %487 = vmatpush1.bf16.msra.mxu0 %v421
      %488 = vmatprep.subr.bf16.mxu0 0
      %489 = vmatpush1.bf16.msra.mxu0 %v422
      %490 = vmatprep.subr.bf16.mxu0 0
      %491 = vmatpush1.bf16.msra.mxu0 %v423
      %492 = vmatprep.subr.bf16.mxu0 0
      %493 = vmatpush1.bf16.msra.mxu0 %v434
      %494 = vmatprep.subr.bf16.mxu0 0
      %495 = vmatpush1.bf16.msra.mxu0 0
      %496 = vmatprep.subr.bf16.mxu0 0
      %497 = vmatpush1.bf16.msra.mxu0 0
      %498 = vmatprep.subr.bf16.mxu0 0
      %499 = vmatpush1.bf16.msra.mxu0 0
      %500 = vmatprep.subr.bf16.mxu0 0
      %501 = vmatpush1.bf16.msra.mxu0 0
      %502 = vmatprep.subr.bf16.mxu0 0
      %503 = vmatpush1.bf16.msra.mxu0 0
      %504 = vmatprep.subr.bf16.mxu0 0
      %505 = vmatpush1.bf16.msra.mxu0 0
      %506 = vmatprep.subr.bf16.mxu0 0
      %507 = vmatpush1.bf16.msra.mxu0 0
      %508 = vmatprep.subr.bf16.mxu0 0
      %509 = vmatpush1.bf16.msra.mxu0 0
      %510 = vmatprep.subr.bf16.mxu0 0
      %511 = vmatpush1.bf16.msra.mxu0 0
      %512 = vmatprep.subr.bf16.mxu0 0
      %513 = vmatpush1.bf16.msra.mxu0 0
      %514 = vmatprep.subr.bf16.mxu0 0
      %515 = vmatpush1.bf16.msra.mxu0 0
      %516 = vmatprep.subr.bf16.mxu0 0
      %517 = vmatpush1.bf16.msra.mxu0 0
      %518 = vmatprep.mubr.bf16.mxu0 0
      %519 = vmatmul.mubr.bf16.gmra.mrb[0].mxu0 %v484
      %v520 = vpop.f32.mrb[0].mxu0
      %v521 = vadd.f32 %v405, %v520
      %v522 = vpop.f32.mrb[0].mxu0
      %v523 = vpop.f32.mrb[0].mxu0
      %v524 = vpop.f32.mrb[0].mxu0
      %525 = vdwg.mxu0
      %v526 = vmax.f32 %v521, 0.0
      %v527 = vpack.c.bf16 %v526, %v526
      %vm528 = vcmask 64512
      %v530 = vsel %vm528, %v527, 0
      %v533 = vsel %vm432, %v480, 0
      %535 = vmatprep.subr.bf16.mxu0 0
      %536 = vmatpush1.bf16.msra.mxu0 %v533
      %537 = vmatprep.subr.bf16.mxu0 0
      %538 = vmatpush1.bf16.msra.mxu0 0
      %539 = vmatprep.subr.bf16.mxu0 0
      %540 = vmatpush1.bf16.msra.mxu0 0
      %541 = vmatprep.subr.bf16.mxu0 0
      %542 = vmatpush1.bf16.msra.mxu0 0
      %543 = vmatprep.subr.bf16.mxu0 0
      %544 = vmatpush1.bf16.msra.mxu0 0
      %545 = vmatprep.subr.bf16.mxu0 0
      %546 = vmatpush1.bf16.msra.mxu0 0
      %547 = vmatprep.subr.bf16.mxu0 0
      %548 = vmatpush1.bf16.msra.mxu0 0
      %549 = vmatprep.subr.bf16.mxu0 0
      %550 = vmatpush1.bf16.msra.mxu0 0
      %551 = vmatprep.subr.bf16.mxu0 0
      %552 = vmatpush1.bf16.msra.mxu0 0
      %553 = vmatprep.subr.bf16.mxu0 0
      %554 = vmatpush1.bf16.msra.mxu0 0
      %555 = vmatprep.subr.bf16.mxu0 0
      %556 = vmatpush1.bf16.msra.mxu0 0
      %557 = vmatprep.subr.bf16.mxu0 0
      %558 = vmatpush1.bf16.msra.mxu0 0
      %559 = vmatprep.subr.bf16.mxu0 0
      %560 = vmatpush1.bf16.msra.mxu0 0
      %561 = vmatprep.subr.bf16.mxu0 0
      %562 = vmatpush1.bf16.msra.mxu0 0
      %563 = vmatprep.subr.bf16.mxu0 0
      %564 = vmatpush1.bf16.msra.mxu0 0
      %565 = vmatprep.subr.bf16.mxu0 0
      %566 = vmatpush1.bf16.msra.mxu0 0
      %567 = vmatprep.mubr.bf16.mxu0 0
      %568 = vmatmul.mubr.bf16.gmra.mrb[0].mxu0 %v530
      %v569 = vpop.f32.mrb[0].mxu0
      %v570 = vadd.f32 0.0, %v569
      %v571 = vpop.f32.mrb[0].mxu0
      %v572 = vpop.f32.mrb[0].mxu0
      %v573 = vpop.f32.mrb[0].mxu0
      %574 = vdwg.mxu0
      %v576 = vsel %vm528, %v477, 0
      %v579 = vsel %vm432, %v399, 0
      %581 = vmatprep.subr.bf16.mxu0 0
      %582 = vmatpush1.bf16.msra.mxu0 %v579
      %583 = vmatprep.subr.bf16.mxu0 0
      %584 = vmatpush1.bf16.msra.mxu0 0
      %585 = vmatprep.subr.bf16.mxu0 0
      %586 = vmatpush1.bf16.msra.mxu0 0
      %587 = vmatprep.subr.bf16.mxu0 0
      %588 = vmatpush1.bf16.msra.mxu0 0
      %589 = vmatprep.subr.bf16.mxu0 0
      %590 = vmatpush1.bf16.msra.mxu0 0
      %591 = vmatprep.subr.bf16.mxu0 0
      %592 = vmatpush1.bf16.msra.mxu0 0
      %593 = vmatprep.subr.bf16.mxu0 0
      %594 = vmatpush1.bf16.msra.mxu0 0
      %595 = vmatprep.subr.bf16.mxu0 0
      %596 = vmatpush1.bf16.msra.mxu0 0
      %597 = vmatprep.subr.bf16.mxu0 0
      %598 = vmatpush1.bf16.msra.mxu0 0
      %599 = vmatprep.subr.bf16.mxu0 0
      %600 = vmatpush1.bf16.msra.mxu0 0
      %601 = vmatprep.subr.bf16.mxu0 0
      %602 = vmatpush1.bf16.msra.mxu0 0
      %603 = vmatprep.subr.bf16.mxu0 0
      %604 = vmatpush1.bf16.msra.mxu0 0
      %605 = vmatprep.subr.bf16.mxu0 0
      %606 = vmatpush1.bf16.msra.mxu0 0
      %607 = vmatprep.subr.bf16.mxu0 0
      %608 = vmatpush1.bf16.msra.mxu0 0
      %609 = vmatprep.subr.bf16.mxu0 0
      %610 = vmatpush1.bf16.msra.mxu0 0
      %611 = vmatprep.subr.bf16.mxu0 0
      %612 = vmatpush1.bf16.msra.mxu0 0
      %613 = vmatprep.mubr.bf16.mxu0 0
      %614 = vmatmul.mubr.bf16.gmra.mrb[0].mxu0 %v576
      %v615 = vpop.f32.mrb[0].mxu0
      %v616 = vadd.f32 %v570, %v615
      %v617 = vpop.f32.mrb[0].mxu0
      %v618 = vpop.f32.mrb[0].mxu0
      %v619 = vpop.f32.mrb[0].mxu0
      %620 = vdwg.mxu0
      %s621 = scalar_lea.vmem %s377, 1
      %v622 = vld [vmem:[%s621] sm:$0x1]
      %v624 = vsel %vm528, %v622, 0
      %626 = vmatprep.subr.bf16.mxu0 0
      %627 = vmatpush1.bf16.msra.mxu0 %v533
      %628 = vmatprep.subr.bf16.mxu0 0
      %629 = vmatpush1.bf16.msra.mxu0 0
      %630 = vmatprep.subr.bf16.mxu0 0
      %631 = vmatpush1.bf16.msra.mxu0 0
      %632 = vmatprep.subr.bf16.mxu0 0
      %633 = vmatpush1.bf16.msra.mxu0 0
      %634 = vmatprep.subr.bf16.mxu0 0
      %635 = vmatpush1.bf16.msra.mxu0 0
      %636 = vmatprep.subr.bf16.mxu0 0
      %637 = vmatpush1.bf16.msra.mxu0 0
      %638 = vmatprep.subr.bf16.mxu0 0
      %639 = vmatpush1.bf16.msra.mxu0 0
      %640 = vmatprep.subr.bf16.mxu0 0
      %641 = vmatpush1.bf16.msra.mxu0 0
      %642 = vmatprep.subr.bf16.mxu0 0
      %643 = vmatpush1.bf16.msra.mxu0 0
      %644 = vmatprep.subr.bf16.mxu0 0
      %645 = vmatpush1.bf16.msra.mxu0 0
      %646 = vmatprep.subr.bf16.mxu0 0
      %647 = vmatpush1.bf16.msra.mxu0 0
      %648 = vmatprep.subr.bf16.mxu0 0
      %649 = vmatpush1.bf16.msra.mxu0 0
      %650 = vmatprep.subr.bf16.mxu0 0
      %651 = vmatpush1.bf16.msra.mxu0 0
      %652 = vmatprep.subr.bf16.mxu0 0
      %653 = vmatpush1.bf16.msra.mxu0 0
      %654 = vmatprep.subr.bf16.mxu0 0
      %655 = vmatpush1.bf16.msra.mxu0 0
      %656 = vmatprep.subr.bf16.mxu0 0
      %657 = vmatpush1.bf16.msra.mxu0 0
      %658 = vmatprep.mubr.bf16.mxu0 0
      %659 = vmatmul.mubr.bf16.gmra.mrb[0].mxu0 %v624
      %v660 = vpop.f32.mrb[0].mxu0
      %v661 = vadd.f32 0.0, %v660
      %v662 = vpop.f32.mrb[0].mxu0
      %v663 = vpop.f32.mrb[0].mxu0
      %v664 = vpop.f32.mrb[0].mxu0
      %665 = vdwg.mxu0
      %v667 = vsel %vm528, %v478, 0
      %669 = vmatprep.subr.bf16.mxu0 0
      %670 = vmatpush1.bf16.msra.mxu0 %v579
      %671 = vmatprep.subr.bf16.mxu0 0
      %672 = vmatpush1.bf16.msra.mxu0 0
      %673 = vmatprep.subr.bf16.mxu0 0
      %674 = vmatpush1.bf16.msra.mxu0 0
      %675 = vmatprep.subr.bf16.mxu0 0
      %676 = vmatpush1.bf16.msra.mxu0 0
      %677 = vmatprep.subr.bf16.mxu0 0
      %678 = vmatpush1.bf16.msra.mxu0 0
      %679 = vmatprep.subr.bf16.mxu0 0
      %680 = vmatpush1.bf16.msra.mxu0 0
      %681 = vmatprep.subr.bf16.mxu0 0
      %682 = vmatpush1.bf16.msra.mxu0 0
      %683 = vmatprep.subr.bf16.mxu0 0
      %684 = vmatpush1.bf16.msra.mxu0 0
      %685 = vmatprep.subr.bf16.mxu0 0
      %686 = vmatpush1.bf16.msra.mxu0 0
      %687 = vmatprep.subr.bf16.mxu0 0
      %688 = vmatpush1.bf16.msra.mxu0 0
      %689 = vmatprep.subr.bf16.mxu0 0
      %690 = vmatpush1.bf16.msra.mxu0 0
      %691 = vmatprep.subr.bf16.mxu0 0
      %692 = vmatpush1.bf16.msra.mxu0 0
      %693 = vmatprep.subr.bf16.mxu0 0
      %694 = vmatpush1.bf16.msra.mxu0 0
      %695 = vmatprep.subr.bf16.mxu0 0
      %696 = vmatpush1.bf16.msra.mxu0 0
      %697 = vmatprep.subr.bf16.mxu0 0
      %698 = vmatpush1.bf16.msra.mxu0 0
      %699 = vmatprep.subr.bf16.mxu0 0
      %700 = vmatpush1.bf16.msra.mxu0 0
      %701 = vmatprep.mubr.bf16.mxu0 0
      %702 = vmatmul.mubr.bf16.gmra.mrb[0].mxu0 %v667
      %v703 = vpop.f32.mrb[0].mxu0
      %v704 = vadd.f32 %v661, %v703
      %v705 = vpop.f32.mrb[0].mxu0
      %v706 = vpop.f32.mrb[0].mxu0
      %v707 = vpop.f32.mrb[0].mxu0
      %708 = vdwg.mxu0
      %s709 = scalar_lea.vmem %s383, 8
      %v710 = vld [vmem:[%s709] sm:$0xf]
      %s711 = scalar_lea.vmem %s372, 2
      %v712 = vld [vmem:[%s711] sm:$0x1]
      %v714 = vsel %vm428, %v712, 0
      %716 = vmatprep.subr.bf16.mxu0 0
      %717 = vmatpush1.bf16.msra.mxu0 %v421
      %718 = vmatprep.subr.bf16.mxu0 0
      %719 = vmatpush1.bf16.msra.mxu0 %v422
      %720 = vmatprep.subr.bf16.mxu0 0
      %721 = vmatpush1.bf16.msra.mxu0 %v423
      %722 = vmatprep.subr.bf16.mxu0 0
      %723 = vmatpush1.bf16.msra.mxu0 %v434
      %724 = vmatprep.subr.bf16.mxu0 0
      %725 = vmatpush1.bf16.msra.mxu0 0
      %726 = vmatprep.subr.bf16.mxu0 0
      %727 = vmatpush1.bf16.msra.mxu0 0
      %728 = vmatprep.subr.bf16.mxu0 0
      %729 = vmatpush1.bf16.msra.mxu0 0
      %730 = vmatprep.subr.bf16.mxu0 0
      %731 = vmatpush1.bf16.msra.mxu0 0
      %732 = vmatprep.subr.bf16.mxu0 0
      %733 = vmatpush1.bf16.msra.mxu0 0
      %734 = vmatprep.subr.bf16.mxu0 0
      %735 = vmatpush1.bf16.msra.mxu0 0
      %736 = vmatprep.subr.bf16.mxu0 0
      %737 = vmatpush1.bf16.msra.mxu0 0
      %738 = vmatprep.subr.bf16.mxu0 0
      %739 = vmatpush1.bf16.msra.mxu0 0
      %740 = vmatprep.subr.bf16.mxu0 0
      %741 = vmatpush1.bf16.msra.mxu0 0
      %742 = vmatprep.subr.bf16.mxu0 0
      %743 = vmatpush1.bf16.msra.mxu0 0
      %744 = vmatprep.subr.bf16.mxu0 0
      %745 = vmatpush1.bf16.msra.mxu0 0
      %746 = vmatprep.subr.bf16.mxu0 0
      %747 = vmatpush1.bf16.msra.mxu0 0
      %748 = vmatprep.mubr.bf16.mxu0 0
      %749 = vmatmul.mubr.bf16.gmra.mrb[0].mxu0 %v714
      %v750 = vpop.f32.mrb[0].mxu0
      %v751 = vadd.f32 %v405, %v750
      %v752 = vpop.f32.mrb[0].mxu0
      %v753 = vpop.f32.mrb[0].mxu0
      %v754 = vpop.f32.mrb[0].mxu0
      %755 = vdwg.mxu0
      %v756 = vmax.f32 %v751, 0.0
      %v757 = vpack.c.bf16 %v756, %v756
      %v759 = vsel %vm528, %v757, 0
      %v762 = vsel %vm432, %v710, 0
      %764 = vmatprep.subr.bf16.mxu0 0
      %765 = vmatpush1.bf16.msra.mxu0 %v762
      %766 = vmatprep.subr.bf16.mxu0 0
      %767 = vmatpush1.bf16.msra.mxu0 0
      %768 = vmatprep.subr.bf16.mxu0 0
      %769 = vmatpush1.bf16.msra.mxu0 0
      %770 = vmatprep.subr.bf16.mxu0 0
      %771 = vmatpush1.bf16.msra.mxu0 0
      %772 = vmatprep.subr.bf16.mxu0 0
      %773 = vmatpush1.bf16.msra.mxu0 0
      %774 = vmatprep.subr.bf16.mxu0 0
      %775 = vmatpush1.bf16.msra.mxu0 0
      %776 = vmatprep.subr.bf16.mxu0 0
      %777 = vmatpush1.bf16.msra.mxu0 0
      %778 = vmatprep.subr.bf16.mxu0 0
      %779 = vmatpush1.bf16.msra.mxu0 0
      %780 = vmatprep.subr.bf16.mxu0 0
      %781 = vmatpush1.bf16.msra.mxu0 0
      %782 = vmatprep.subr.bf16.mxu0 0
      %783 = vmatpush1.bf16.msra.mxu0 0
      %784 = vmatprep.subr.bf16.mxu0 0
      %785 = vmatpush1.bf16.msra.mxu0 0
      %786 = vmatprep.subr.bf16.mxu0 0
      %787 = vmatpush1.bf16.msra.mxu0 0
      %788 = vmatprep.subr.bf16.mxu0 0
      %789 = vmatpush1.bf16.msra.mxu0 0
      %790 = vmatprep.subr.bf16.mxu0 0
      %791 = vmatpush1.bf16.msra.mxu0 0
      %792 = vmatprep.subr.bf16.mxu0 0
      %793 = vmatpush1.bf16.msra.mxu0 0
      %794 = vmatprep.subr.bf16.mxu0 0
      %795 = vmatpush1.bf16.msra.mxu0 0
      %796 = vmatprep.mubr.bf16.mxu0 0
      %797 = vmatmul.mubr.bf16.gmra.mrb[0].mxu0 %v759
      %v798 = vpop.f32.mrb[0].mxu0
      %v799 = vadd.f32 0.0, %v798
      %v800 = vpop.f32.mrb[0].mxu0
      %v801 = vpop.f32.mrb[0].mxu0
      %v802 = vpop.f32.mrb[0].mxu0
      %803 = vdwg.mxu0
      %v804 = vadd.f32 %v616, %v799
      %s805 = scalar_lea.vmem %s377, 2
      %v806 = vld [vmem:[%s805] sm:$0x1]
      %v808 = vsel %vm528, %v806, 0
      %810 = vmatprep.subr.bf16.mxu0 0
      %811 = vmatpush1.bf16.msra.mxu0 %v762
      %812 = vmatprep.subr.bf16.mxu0 0
      %813 = vmatpush1.bf16.msra.mxu0 0
      %814 = vmatprep.subr.bf16.mxu0 0
      %815 = vmatpush1.bf16.msra.mxu0 0
      %816 = vmatprep.subr.bf16.mxu0 0
      %817 = vmatpush1.bf16.msra.mxu0 0
      %818 = vmatprep.subr.bf16.mxu0 0
      %819 = vmatpush1.bf16.msra.mxu0 0
      %820 = vmatprep.subr.bf16.mxu0 0
      %821 = vmatpush1.bf16.msra.mxu0 0
      %822 = vmatprep.subr.bf16.mxu0 0
      %823 = vmatpush1.bf16.msra.mxu0 0
      %824 = vmatprep.subr.bf16.mxu0 0
      %825 = vmatpush1.bf16.msra.mxu0 0
      %826 = vmatprep.subr.bf16.mxu0 0
      %827 = vmatpush1.bf16.msra.mxu0 0
      %828 = vmatprep.subr.bf16.mxu0 0
      %829 = vmatpush1.bf16.msra.mxu0 0
      %830 = vmatprep.subr.bf16.mxu0 0
      %831 = vmatpush1.bf16.msra.mxu0 0
      %832 = vmatprep.subr.bf16.mxu0 0
      %833 = vmatpush1.bf16.msra.mxu0 0
      %834 = vmatprep.subr.bf16.mxu0 0
      %835 = vmatpush1.bf16.msra.mxu0 0
      %836 = vmatprep.subr.bf16.mxu0 0
      %837 = vmatpush1.bf16.msra.mxu0 0
      %838 = vmatprep.subr.bf16.mxu0 0
      %839 = vmatpush1.bf16.msra.mxu0 0
      %840 = vmatprep.subr.bf16.mxu0 0
      %841 = vmatpush1.bf16.msra.mxu0 0
      %842 = vmatprep.mubr.bf16.mxu0 0
      %843 = vmatmul.mubr.bf16.gmra.mrb[0].mxu0 %v808
      %v844 = vpop.f32.mrb[0].mxu0
      %v845 = vadd.f32 0.0, %v844
      %v846 = vpop.f32.mrb[0].mxu0
      %v847 = vpop.f32.mrb[0].mxu0
      %v848 = vpop.f32.mrb[0].mxu0
      %849 = vdwg.mxu0
      %v850 = vadd.f32 %v704, %v845
      %s851 = scalar_lea.vmem %s383, 12
      %v852 = vld [vmem:[%s851] sm:$0xf]
      %s853 = scalar_lea.vmem %s372, 3
      %v854 = vld [vmem:[%s853] sm:$0x1]
      %v856 = vsel %vm428, %v854, 0
      %858 = vmatprep.subr.bf16.mxu0 0
      %859 = vmatpush1.bf16.msra.mxu0 %v421
      %860 = vmatprep.subr.bf16.mxu0 0
      %861 = vmatpush1.bf16.msra.mxu0 %v422
      %862 = vmatprep.subr.bf16.mxu0 0
      %863 = vmatpush1.bf16.msra.mxu0 %v423
      %864 = vmatprep.subr.bf16.mxu0 0
      %865 = vmatpush1.bf16.msra.mxu0 %v434
      %866 = vmatprep.subr.bf16.mxu0 0
      %867 = vmatpush1.bf16.msra.mxu0 0
      %868 = vmatprep.subr.bf16.mxu0 0
      %869 = vmatpush1.bf16.msra.mxu0 0
      %870 = vmatprep.subr.bf16.mxu0 0
      %871 = vmatpush1.bf16.msra.mxu0 0
      %872 = vmatprep.subr.bf16.mxu0 0
      %873 = vmatpush1.bf16.msra.mxu0 0
      %874 = vmatprep.subr.bf16.mxu0 0
      %875 = vmatpush1.bf16.msra.mxu0 0
      %876 = vmatprep.subr.bf16.mxu0 0
      %877 = vmatpush1.bf16.msra.mxu0 0
      %878 = vmatprep.subr.bf16.mxu0 0
      %879 = vmatpush1.bf16.msra.mxu0 0
      %880 = vmatprep.subr.bf16.mxu0 0
      %881 = vmatpush1.bf16.msra.mxu0 0
      %882 = vmatprep.subr.bf16.mxu0 0
      %883 = vmatpush1.bf16.msra.mxu0 0
      %884 = vmatprep.subr.bf16.mxu0 0
      %885 = vmatpush1.bf16.msra.mxu0 0
      %886 = vmatprep.subr.bf16.mxu0 0
      %887 = vmatpush1.bf16.msra.mxu0 0
      %888 = vmatprep.subr.bf16.mxu0 0
      %889 = vmatpush1.bf16.msra.mxu0 0
      %890 = vmatprep.mubr.bf16.mxu0 0
      %891 = vmatmul.mubr.bf16.gmra.mrb[0].mxu0 %v856
      %v892 = vpop.f32.mrb[0].mxu0
      %v893 = vadd.f32 %v405, %v892
      %v894 = vpop.f32.mrb[0].mxu0
      %v895 = vpop.f32.mrb[0].mxu0
      %v896 = vpop.f32.mrb[0].mxu0
      %897 = vdwg.mxu0
      %v898 = vmax.f32 %v893, 0.0
      %v899 = vpack.c.bf16 %v898, %v898
      %v901 = vsel %vm528, %v899, 0
      %v904 = vsel %vm432, %v852, 0
      %906 = vmatprep.subr.bf16.mxu0 0
      %907 = vmatpush1.bf16.msra.mxu0 %v904
      %908 = vmatprep.subr.bf16.mxu0 0
      %909 = vmatpush1.bf16.msra.mxu0 0
      %910 = vmatprep.subr.bf16.mxu0 0
      %911 = vmatpush1.bf16.msra.mxu0 0
      %912 = vmatprep.subr.bf16.mxu0 0
      %913 = vmatpush1.bf16.msra.mxu0 0
      %914 = vmatprep.subr.bf16.mxu0 0
      %915 = vmatpush1.bf16.msra.mxu0 0
      %916 = vmatprep.subr.bf16.mxu0 0
      %917 = vmatpush1.bf16.msra.mxu0 0
      %918 = vmatprep.subr.bf16.mxu0 0
      %919 = vmatpush1.bf16.msra.mxu0 0
      %920 = vmatprep.subr.bf16.mxu0 0
      %921 = vmatpush1.bf16.msra.mxu0 0
      %922 = vmatprep.subr.bf16.mxu0 0
      %923 = vmatpush1.bf16.msra.mxu0 0
      %924 = vmatprep.subr.bf16.mxu0 0
      %925 = vmatpush1.bf16.msra.mxu0 0
      %926 = vmatprep.subr.bf16.mxu0 0
      %927 = vmatpush1.bf16.msra.mxu0 0
      %928 = vmatprep.subr.bf16.mxu0 0
      %929 = vmatpush1.bf16.msra.mxu0 0
      %930 = vmatprep.subr.bf16.mxu0 0
      %931 = vmatpush1.bf16.msra.mxu0 0
      %932 = vmatprep.subr.bf16.mxu0 0
      %933 = vmatpush1.bf16.msra.mxu0 0
      %934 = vmatprep.subr.bf16.mxu0 0
      %935 = vmatpush1.bf16.msra.mxu0 0
      %936 = vmatprep.subr.bf16.mxu0 0
      %937 = vmatpush1.bf16.msra.mxu0 0
      %938 = vmatprep.mubr.bf16.mxu0 0
      %939 = vmatmul.mubr.bf16.gmra.mrb[0].mxu0 %v901
      %v940 = vpop.f32.mrb[0].mxu0
      %v941 = vadd.f32 0.0, %v940
      %v942 = vpop.f32.mrb[0].mxu0
      %v943 = vpop.f32.mrb[0].mxu0
      %v944 = vpop.f32.mrb[0].mxu0
      %945 = vdwg.mxu0
      %v946 = vadd.f32 %v804, %v941
      %s947 = scalar_lea.vmem %s377, 3
      %v948 = vld [vmem:[%s947] sm:$0x1]
      %v950 = vsel %vm528, %v948, 0
      %952 = vmatprep.subr.bf16.mxu0 0
      %953 = vmatpush1.bf16.msra.mxu0 %v904
      %954 = vmatprep.subr.bf16.mxu0 0
      %955 = vmatpush1.bf16.msra.mxu0 0
      %956 = vmatprep.subr.bf16.mxu0 0
      %957 = vmatpush1.bf16.msra.mxu0 0
      %958 = vmatprep.subr.bf16.mxu0 0
      %959 = vmatpush1.bf16.msra.mxu0 0
      %960 = vmatprep.subr.bf16.mxu0 0
      %961 = vmatpush1.bf16.msra.mxu0 0
      %962 = vmatprep.subr.bf16.mxu0 0
      %963 = vmatpush1.bf16.msra.mxu0 0
      %964 = vmatprep.subr.bf16.mxu0 0
      %965 = vmatpush1.bf16.msra.mxu0 0
      %966 = vmatprep.subr.bf16.mxu0 0
      %967 = vmatpush1.bf16.msra.mxu0 0
      %968 = vmatprep.subr.bf16.mxu0 0
      %969 = vmatpush1.bf16.msra.mxu0 0
      %970 = vmatprep.subr.bf16.mxu0 0
      %971 = vmatpush1.bf16.msra.mxu0 0
      %972 = vmatprep.subr.bf16.mxu0 0
      %973 = vmatpush1.bf16.msra.mxu0 0
      %974 = vmatprep.subr.bf16.mxu0 0
      %975 = vmatpush1.bf16.msra.mxu0 0
      %976 = vmatprep.subr.bf16.mxu0 0
      %977 = vmatpush1.bf16.msra.mxu0 0
      %978 = vmatprep.subr.bf16.mxu0 0
      %979 = vmatpush1.bf16.msra.mxu0 0
      %980 = vmatprep.subr.bf16.mxu0 0
      %981 = vmatpush1.bf16.msra.mxu0 0
      %982 = vmatprep.subr.bf16.mxu0 0
      %983 = vmatpush1.bf16.msra.mxu0 0
      %984 = vmatprep.mubr.bf16.mxu0 0
      %985 = vmatmul.mubr.bf16.gmra.mrb[0].mxu0 %v950
      %v986 = vpop.f32.mrb[0].mxu0
      %v987 = vadd.f32 0.0, %v986
      %v988 = vpop.f32.mrb[0].mxu0
      %v989 = vpop.f32.mrb[0].mxu0
      %v990 = vpop.f32.mrb[0].mxu0
      %991 = vdwg.mxu0
      %v992 = vadd.f32 %v850, %v987
      %s993 = scalar_lea.vmem %s383, 16
      %v994 = vld [vmem:[%s993] sm:$0xf]
      %s995 = scalar_lea.vmem %s372, 4
      %v996 = vld [vmem:[%s995] sm:$0x1]
      %v998 = vsel %vm428, %v996, 0
      %1000 = vmatprep.subr.bf16.mxu0 0
      %1001 = vmatpush1.bf16.msra.mxu0 %v421
      %1002 = vmatprep.subr.bf16.mxu0 0
      %1003 = vmatpush1.bf16.msra.mxu0 %v422
      %1004 = vmatprep.subr.bf16.mxu0 0
      %1005 = vmatpush1.bf16.msra.mxu0 %v423
      %1006 = vmatprep.subr.bf16.mxu0 0
      %1007 = vmatpush1.bf16.msra.mxu0 %v434
      %1008 = vmatprep.subr.bf16.mxu0 0
      %1009 = vmatpush1.bf16.msra.mxu0 0
      %1010 = vmatprep.subr.bf16.mxu0 0
      %1011 = vmatpush1.bf16.msra.mxu0 0
      %1012 = vmatprep.subr.bf16.mxu0 0
      %1013 = vmatpush1.bf16.msra.mxu0 0
      %1014 = vmatprep.subr.bf16.mxu0 0
      %1015 = vmatpush1.bf16.msra.mxu0 0
      %1016 = vmatprep.subr.bf16.mxu0 0
      %1017 = vmatpush1.bf16.msra.mxu0 0
      %1018 = vmatprep.subr.bf16.mxu0 0
      %1019 = vmatpush1.bf16.msra.mxu0 0
      %1020 = vmatprep.subr.bf16.mxu0 0
      %1021 = vmatpush1.bf16.msra.mxu0 0
      %1022 = vmatprep.subr.bf16.mxu0 0
      %1023 = vmatpush1.bf16.msra.mxu0 0
      %1024 = vmatprep.subr.bf16.mxu0 0
      %1025 = vmatpush1.bf16.msra.mxu0 0
      %1026 = vmatprep.subr.bf16.mxu0 0
      %1027 = vmatpush1.bf16.msra.mxu0 0
      %1028 = vmatprep.subr.bf16.mxu0 0
      %1029 = vmatpush1.bf16.msra.mxu0 0
      %1030 = vmatprep.subr.bf16.mxu0 0
      %1031 = vmatpush1.bf16.msra.mxu0 0
      %1032 = vmatprep.mubr.bf16.mxu0 0
      %1033 = vmatmul.mubr.bf16.gmra.mrb[0].mxu0 %v998
      %v1034 = vpop.f32.mrb[0].mxu0
      %v1035 = vadd.f32 %v405, %v1034
      %v1036 = vpop.f32.mrb[0].mxu0
      %v1037 = vpop.f32.mrb[0].mxu0
      %v1038 = vpop.f32.mrb[0].mxu0
      %1039 = vdwg.mxu0
      %v1040 = vmax.f32 %v1035, 0.0
      %v1041 = vpack.c.bf16 %v1040, %v1040
      %v1043 = vsel %vm528, %v1041, 0
      %v1046 = vsel %vm432, %v994, 0
      %1048 = vmatprep.subr.bf16.mxu0 0
      %1049 = vmatpush1.bf16.msra.mxu0 %v1046
      %1050 = vmatprep.subr.bf16.mxu0 0
      %1051 = vmatpush1.bf16.msra.mxu0 0
      %1052 = vmatprep.subr.bf16.mxu0 0
      %1053 = vmatpush1.bf16.msra.mxu0 0
      %1054 = vmatprep.subr.bf16.mxu0 0
      %1055 = vmatpush1.bf16.msra.mxu0 0
      %1056 = vmatprep.subr.bf16.mxu0 0
      %1057 = vmatpush1.bf16.msra.mxu0 0
      %1058 = vmatprep.subr.bf16.mxu0 0
      %1059 = vmatpush1.bf16.msra.mxu0 0
      %1060 = vmatprep.subr.bf16.mxu0 0
      %1061 = vmatpush1.bf16.msra.mxu0 0
      %1062 = vmatprep.subr.bf16.mxu0 0
      %1063 = vmatpush1.bf16.msra.mxu0 0
      %1064 = vmatprep.subr.bf16.mxu0 0
      %1065 = vmatpush1.bf16.msra.mxu0 0
      %1066 = vmatprep.subr.bf16.mxu0 0
      %1067 = vmatpush1.bf16.msra.mxu0 0
      %1068 = vmatprep.subr.bf16.mxu0 0
      %1069 = vmatpush1.bf16.msra.mxu0 0
      %1070 = vmatprep.subr.bf16.mxu0 0
      %1071 = vmatpush1.bf16.msra.mxu0 0
      %1072 = vmatprep.subr.bf16.mxu0 0
      %1073 = vmatpush1.bf16.msra.mxu0 0
      %1074 = vmatprep.subr.bf16.mxu0 0
      %1075 = vmatpush1.bf16.msra.mxu0 0
      %1076 = vmatprep.subr.bf16.mxu0 0
      %1077 = vmatpush1.bf16.msra.mxu0 0
      %1078 = vmatprep.subr.bf16.mxu0 0
      %1079 = vmatpush1.bf16.msra.mxu0 0
      %1080 = vmatprep.mubr.bf16.mxu0 0
      %1081 = vmatmul.mubr.bf16.gmra.mrb[0].mxu0 %v1043
      %v1082 = vpop.f32.mrb[0].mxu0
      %v1083 = vadd.f32 0.0, %v1082
      %v1084 = vpop.f32.mrb[0].mxu0
      %v1085 = vpop.f32.mrb[0].mxu0
      %v1086 = vpop.f32.mrb[0].mxu0
      %1087 = vdwg.mxu0
      %v1088 = vadd.f32 %v946, %v1083
      %s1089 = scalar_lea.vmem %s377, 4
      %v1090 = vld [vmem:[%s1089] sm:$0x1]
      %v1092 = vsel %vm528, %v1090, 0
      %1094 = vmatprep.subr.bf16.mxu0 0
      %1095 = vmatpush1.bf16.msra.mxu0 %v1046
      %1096 = vmatprep.subr.bf16.mxu0 0
      %1097 = vmatpush1.bf16.msra.mxu0 0
      %1098 = vmatprep.subr.bf16.mxu0 0
      %1099 = vmatpush1.bf16.msra.mxu0 0
      %1100 = vmatprep.subr.bf16.mxu0 0
      %1101 = vmatpush1.bf16.msra.mxu0 0
      %1102 = vmatprep.subr.bf16.mxu0 0
      %1103 = vmatpush1.bf16.msra.mxu0 0
      %1104 = vmatprep.subr.bf16.mxu0 0
      %1105 = vmatpush1.bf16.msra.mxu0 0
      %1106 = vmatprep.subr.bf16.mxu0 0
      %1107 = vmatpush1.bf16.msra.mxu0 0
      %1108 = vmatprep.subr.bf16.mxu0 0
      %1109 = vmatpush1.bf16.msra.mxu0 0
      %1110 = vmatprep.subr.bf16.mxu0 0
      %1111 = vmatpush1.bf16.msra.mxu0 0
      %1112 = vmatprep.subr.bf16.mxu0 0
      %1113 = vmatpush1.bf16.msra.mxu0 0
      %1114 = vmatprep.subr.bf16.mxu0 0
      %1115 = vmatpush1.bf16.msra.mxu0 0
      %1116 = vmatprep.subr.bf16.mxu0 0
      %1117 = vmatpush1.bf16.msra.mxu0 0
      %1118 = vmatprep.subr.bf16.mxu0 0
      %1119 = vmatpush1.bf16.msra.mxu0 0
      %1120 = vmatprep.subr.bf16.mxu0 0
      %1121 = vmatpush1.bf16.msra.mxu0 0
      %1122 = vmatprep.subr.bf16.mxu0 0
      %1123 = vmatpush1.bf16.msra.mxu0 0
      %1124 = vmatprep.subr.bf16.mxu0 0
      %1125 = vmatpush1.bf16.msra.mxu0 0
      %1126 = vmatprep.mubr.bf16.mxu0 0
      %1127 = vmatmul.mubr.bf16.gmra.mrb[0].mxu0 %v1092
      %v1128 = vpop.f32.mrb[0].mxu0
      %v1129 = vadd.f32 0.0, %v1128
      %v1130 = vpop.f32.mrb[0].mxu0
      %v1131 = vpop.f32.mrb[0].mxu0
      %v1132 = vpop.f32.mrb[0].mxu0
      %1133 = vdwg.mxu0
      %v1134 = vadd.f32 %v992, %v1129
      %s1135 = scalar_lea.vmem %s383, 20
      %v1136 = vld [vmem:[%s1135] sm:$0xf]
      %s1137 = scalar_lea.vmem %s372, 5
      %v1138 = vld [vmem:[%s1137] sm:$0x1]
      %v1140 = vsel %vm428, %v1138, 0
      %1142 = vmatprep.subr.bf16.mxu0 0
      %1143 = vmatpush1.bf16.msra.mxu0 %v421
      %1144 = vmatprep.subr.bf16.mxu0 0
      %1145 = vmatpush1.bf16.msra.mxu0 %v422
      %1146 = vmatprep.subr.bf16.mxu0 0
      %1147 = vmatpush1.bf16.msra.mxu0 %v423
      %1148 = vmatprep.subr.bf16.mxu0 0
      %1149 = vmatpush1.bf16.msra.mxu0 %v434
      %1150 = vmatprep.subr.bf16.mxu0 0
      %1151 = vmatpush1.bf16.msra.mxu0 0
      %1152 = vmatprep.subr.bf16.mxu0 0
      %1153 = vmatpush1.bf16.msra.mxu0 0
      %1154 = vmatprep.subr.bf16.mxu0 0
      %1155 = vmatpush1.bf16.msra.mxu0 0
      %1156 = vmatprep.subr.bf16.mxu0 0
      %1157 = vmatpush1.bf16.msra.mxu0 0
      %1158 = vmatprep.subr.bf16.mxu0 0
      %1159 = vmatpush1.bf16.msra.mxu0 0
      %1160 = vmatprep.subr.bf16.mxu0 0
      %1161 = vmatpush1.bf16.msra.mxu0 0
      %1162 = vmatprep.subr.bf16.mxu0 0
      %1163 = vmatpush1.bf16.msra.mxu0 0
      %1164 = vmatprep.subr.bf16.mxu0 0
      %1165 = vmatpush1.bf16.msra.mxu0 0
      %1166 = vmatprep.subr.bf16.mxu0 0
      %1167 = vmatpush1.bf16.msra.mxu0 0
      %1168 = vmatprep.subr.bf16.mxu0 0
      %1169 = vmatpush1.bf16.msra.mxu0 0
      %1170 = vmatprep.subr.bf16.mxu0 0
      %1171 = vmatpush1.bf16.msra.mxu0 0
      %1172 = vmatprep.subr.bf16.mxu0 0
      %1173 = vmatpush1.bf16.msra.mxu0 0
      %1174 = vmatprep.mubr.bf16.mxu0 0
      %1175 = vmatmul.mubr.bf16.gmra.mrb[0].mxu0 %v1140
      %v1176 = vpop.f32.mrb[0].mxu0
      %v1177 = vadd.f32 %v405, %v1176
      %v1178 = vpop.f32.mrb[0].mxu0
      %v1179 = vpop.f32.mrb[0].mxu0
      %v1180 = vpop.f32.mrb[0].mxu0
      %1181 = vdwg.mxu0
      %v1182 = vmax.f32 %v1177, 0.0
      %v1183 = vpack.c.bf16 %v1182, %v1182
      %v1185 = vsel %vm528, %v1183, 0
      %v1188 = vsel %vm432, %v1136, 0
      %1190 = vmatprep.subr.bf16.mxu0 0
      %1191 = vmatpush1.bf16.msra.mxu0 %v1188
      %1192 = vmatprep.subr.bf16.mxu0 0
      %1193 = vmatpush1.bf16.msra.mxu0 0
      %1194 = vmatprep.subr.bf16.mxu0 0
      %1195 = vmatpush1.bf16.msra.mxu0 0
      %1196 = vmatprep.subr.bf16.mxu0 0
      %1197 = vmatpush1.bf16.msra.mxu0 0
      %1198 = vmatprep.subr.bf16.mxu0 0
      %1199 = vmatpush1.bf16.msra.mxu0 0
      %1200 = vmatprep.subr.bf16.mxu0 0
      %1201 = vmatpush1.bf16.msra.mxu0 0
      %1202 = vmatprep.subr.bf16.mxu0 0
      %1203 = vmatpush1.bf16.msra.mxu0 0
      %1204 = vmatprep.subr.bf16.mxu0 0
      %1205 = vmatpush1.bf16.msra.mxu0 0
      %1206 = vmatprep.subr.bf16.mxu0 0
      %1207 = vmatpush1.bf16.msra.mxu0 0
      %1208 = vmatprep.subr.bf16.mxu0 0
      %1209 = vmatpush1.bf16.msra.mxu0 0
      %1210 = vmatprep.subr.bf16.mxu0 0
      %1211 = vmatpush1.bf16.msra.mxu0 0
      %1212 = vmatprep.subr.bf16.mxu0 0
      %1213 = vmatpush1.bf16.msra.mxu0 0
      %1214 = vmatprep.subr.bf16.mxu0 0
      %1215 = vmatpush1.bf16.msra.mxu0 0
      %1216 = vmatprep.subr.bf16.mxu0 0
      %1217 = vmatpush1.bf16.msra.mxu0 0
      %1218 = vmatprep.subr.bf16.mxu0 0
      %1219 = vmatpush1.bf16.msra.mxu0 0
      %1220 = vmatprep.subr.bf16.mxu0 0
      %1221 = vmatpush1.bf16.msra.mxu0 0
      %1222 = vmatprep.mubr.bf16.mxu0 0
      %1223 = vmatmul.mubr.bf16.gmra.mrb[0].mxu0 %v1185
      %v1224 = vpop.f32.mrb[0].mxu0
      %v1225 = vadd.f32 0.0, %v1224
      %v1226 = vpop.f32.mrb[0].mxu0
      %v1227 = vpop.f32.mrb[0].mxu0
      %v1228 = vpop.f32.mrb[0].mxu0
      %1229 = vdwg.mxu0
      %v1230 = vadd.f32 %v1088, %v1225
      %s1231 = scalar_lea.vmem %s377, 5
      %v1232 = vld [vmem:[%s1231] sm:$0x1]
      %v1234 = vsel %vm528, %v1232, 0
      %1236 = vmatprep.subr.bf16.mxu0 0
      %1237 = vmatpush1.bf16.msra.mxu0 %v1188
      %1238 = vmatprep.subr.bf16.mxu0 0
      %1239 = vmatpush1.bf16.msra.mxu0 0
      %1240 = vmatprep.subr.bf16.mxu0 0
      %1241 = vmatpush1.bf16.msra.mxu0 0
      %1242 = vmatprep.subr.bf16.mxu0 0
      %1243 = vmatpush1.bf16.msra.mxu0 0
      %1244 = vmatprep.subr.bf16.mxu0 0
      %1245 = vmatpush1.bf16.msra.mxu0 0
      %1246 = vmatprep.subr.bf16.mxu0 0
      %1247 = vmatpush1.bf16.msra.mxu0 0
      %1248 = vmatprep.subr.bf16.mxu0 0
      %1249 = vmatpush1.bf16.msra.mxu0 0
      %1250 = vmatprep.subr.bf16.mxu0 0
      %1251 = vmatpush1.bf16.msra.mxu0 0
      %1252 = vmatprep.subr.bf16.mxu0 0
      %1253 = vmatpush1.bf16.msra.mxu0 0
      %1254 = vmatprep.subr.bf16.mxu0 0
      %1255 = vmatpush1.bf16.msra.mxu0 0
      %1256 = vmatprep.subr.bf16.mxu0 0
      %1257 = vmatpush1.bf16.msra.mxu0 0
      %1258 = vmatprep.subr.bf16.mxu0 0
      %1259 = vmatpush1.bf16.msra.mxu0 0
      %1260 = vmatprep.subr.bf16.mxu0 0
      %1261 = vmatpush1.bf16.msra.mxu0 0
      %1262 = vmatprep.subr.bf16.mxu0 0
      %1263 = vmatpush1.bf16.msra.mxu0 0
      %1264 = vmatprep.subr.bf16.mxu0 0
      %1265 = vmatpush1.bf16.msra.mxu0 0
      %1266 = vmatprep.subr.bf16.mxu0 0
      %1267 = vmatpush1.bf16.msra.mxu0 0
      %1268 = vmatprep.mubr.bf16.mxu0 0
      %1269 = vmatmul.mubr.bf16.gmra.mrb[0].mxu0 %v1234
      %v1270 = vpop.f32.mrb[0].mxu0
      %v1271 = vadd.f32 0.0, %v1270
      %v1272 = vpop.f32.mrb[0].mxu0
      %v1273 = vpop.f32.mrb[0].mxu0
      %v1274 = vpop.f32.mrb[0].mxu0
      %1275 = vdwg.mxu0
      %v1276 = vadd.f32 %v1134, %v1271
      %s1277 = scalar_lea.vmem %s383, 24
      %v1278 = vld [vmem:[%s1277] sm:$0xf]
      %s1279 = scalar_lea.vmem %s372, 6
      %v1280 = vld [vmem:[%s1279] sm:$0x1]
      %v1282 = vsel %vm428, %v1280, 0
      %1284 = vmatprep.subr.bf16.mxu0 0
      %1285 = vmatpush1.bf16.msra.mxu0 %v421
      %1286 = vmatprep.subr.bf16.mxu0 0
      %1287 = vmatpush1.bf16.msra.mxu0 %v422
      %1288 = vmatprep.subr.bf16.mxu0 0
      %1289 = vmatpush1.bf16.msra.mxu0 %v423
      %1290 = vmatprep.subr.bf16.mxu0 0
      %1291 = vmatpush1.bf16.msra.mxu0 %v434
      %1292 = vmatprep.subr.bf16.mxu0 0
      %1293 = vmatpush1.bf16.msra.mxu0 0
      %1294 = vmatprep.subr.bf16.mxu0 0
      %1295 = vmatpush1.bf16.msra.mxu0 0
      %1296 = vmatprep.subr.bf16.mxu0 0
      %1297 = vmatpush1.bf16.msra.mxu0 0
      %1298 = vmatprep.subr.bf16.mxu0 0
      %1299 = vmatpush1.bf16.msra.mxu0 0
      %1300 = vmatprep.subr.bf16.mxu0 0
      %1301 = vmatpush1.bf16.msra.mxu0 0
      %1302 = vmatprep.subr.bf16.mxu0 0
      %1303 = vmatpush1.bf16.msra.mxu0 0
      %1304 = vmatprep.subr.bf16.mxu0 0
      %1305 = vmatpush1.bf16.msra.mxu0 0
      %1306 = vmatprep.subr.bf16.mxu0 0
      %1307 = vmatpush1.bf16.msra.mxu0 0
      %1308 = vmatprep.subr.bf16.mxu0 0
      %1309 = vmatpush1.bf16.msra.mxu0 0
      %1310 = vmatprep.subr.bf16.mxu0 0
      %1311 = vmatpush1.bf16.msra.mxu0 0
      %1312 = vmatprep.subr.bf16.mxu0 0
      %1313 = vmatpush1.bf16.msra.mxu0 0
      %1314 = vmatprep.subr.bf16.mxu0 0
      %1315 = vmatpush1.bf16.msra.mxu0 0
      %1316 = vmatprep.mubr.bf16.mxu0 0
      %1317 = vmatmul.mubr.bf16.gmra.mrb[0].mxu0 %v1282
      %v1318 = vpop.f32.mrb[0].mxu0
      %v1319 = vadd.f32 %v405, %v1318
      %v1320 = vpop.f32.mrb[0].mxu0
      %v1321 = vpop.f32.mrb[0].mxu0
      %v1322 = vpop.f32.mrb[0].mxu0
      %1323 = vdwg.mxu0
      %v1324 = vmax.f32 %v1319, 0.0
      %v1325 = vpack.c.bf16 %v1324, %v1324
      %v1327 = vsel %vm528, %v1325, 0
      %v1330 = vsel %vm432, %v1278, 0
      %1332 = vmatprep.subr.bf16.mxu0 0
      %1333 = vmatpush1.bf16.msra.mxu0 %v1330
      %1334 = vmatprep.subr.bf16.mxu0 0
      %1335 = vmatpush1.bf16.msra.mxu0 0
      %1336 = vmatprep.subr.bf16.mxu0 0
      %1337 = vmatpush1.bf16.msra.mxu0 0
      %1338 = vmatprep.subr.bf16.mxu0 0
      %1339 = vmatpush1.bf16.msra.mxu0 0
      %1340 = vmatprep.subr.bf16.mxu0 0
      %1341 = vmatpush1.bf16.msra.mxu0 0
      %1342 = vmatprep.subr.bf16.mxu0 0
      %1343 = vmatpush1.bf16.msra.mxu0 0
      %1344 = vmatprep.subr.bf16.mxu0 0
      %1345 = vmatpush1.bf16.msra.mxu0 0
      %1346 = vmatprep.subr.bf16.mxu0 0
      %1347 = vmatpush1.bf16.msra.mxu0 0
      %1348 = vmatprep.subr.bf16.mxu0 0
      %1349 = vmatpush1.bf16.msra.mxu0 0
      %1350 = vmatprep.subr.bf16.mxu0 0
      %1351 = vmatpush1.bf16.msra.mxu0 0
      %1352 = vmatprep.subr.bf16.mxu0 0
      %1353 = vmatpush1.bf16.msra.mxu0 0
      %1354 = vmatprep.subr.bf16.mxu0 0
      %1355 = vmatpush1.bf16.msra.mxu0 0
      %1356 = vmatprep.subr.bf16.mxu0 0
      %1357 = vmatpush1.bf16.msra.mxu0 0
      %1358 = vmatprep.subr.bf16.mxu0 0
      %1359 = vmatpush1.bf16.msra.mxu0 0
      %1360 = vmatprep.subr.bf16.mxu0 0
      %1361 = vmatpush1.bf16.msra.mxu0 0
      %1362 = vmatprep.subr.bf16.mxu0 0
      %1363 = vmatpush1.bf16.msra.mxu0 0
      %1364 = vmatprep.mubr.bf16.mxu0 0
      %1365 = vmatmul.mubr.bf16.gmra.mrb[0].mxu0 %v1327
      %v1366 = vpop.f32.mrb[0].mxu0
      %v1367 = vadd.f32 0.0, %v1366
      %v1368 = vpop.f32.mrb[0].mxu0
      %v1369 = vpop.f32.mrb[0].mxu0
      %v1370 = vpop.f32.mrb[0].mxu0
      %1371 = vdwg.mxu0
      %v1372 = vadd.f32 %v1230, %v1367
      %s1373 = scalar_lea.vmem %s377, 6
      %v1374 = vld [vmem:[%s1373] sm:$0x1]
      %v1376 = vsel %vm528, %v1374, 0
      %1378 = vmatprep.subr.bf16.mxu0 0
      %1379 = vmatpush1.bf16.msra.mxu0 %v1330
      %1380 = vmatprep.subr.bf16.mxu0 0
      %1381 = vmatpush1.bf16.msra.mxu0 0
      %1382 = vmatprep.subr.bf16.mxu0 0
      %1383 = vmatpush1.bf16.msra.mxu0 0
      %1384 = vmatprep.subr.bf16.mxu0 0
      %1385 = vmatpush1.bf16.msra.mxu0 0
      %1386 = vmatprep.subr.bf16.mxu0 0
      %1387 = vmatpush1.bf16.msra.mxu0 0
      %1388 = vmatprep.subr.bf16.mxu0 0
      %1389 = vmatpush1.bf16.msra.mxu0 0
      %1390 = vmatprep.subr.bf16.mxu0 0
      %1391 = vmatpush1.bf16.msra.mxu0 0
      %1392 = vmatprep.subr.bf16.mxu0 0
      %1393 = vmatpush1.bf16.msra.mxu0 0
      %1394 = vmatprep.subr.bf16.mxu0 0
      %1395 = vmatpush1.bf16.msra.mxu0 0
      %1396 = vmatprep.subr.bf16.mxu0 0
      %1397 = vmatpush1.bf16.msra.mxu0 0
      %1398 = vmatprep.subr.bf16.mxu0 0
      %1399 = vmatpush1.bf16.msra.mxu0 0
      %1400 = vmatprep.subr.bf16.mxu0 0
      %1401 = vmatpush1.bf16.msra.mxu0 0
      %1402 = vmatprep.subr.bf16.mxu0 0
      %1403 = vmatpush1.bf16.msra.mxu0 0
      %1404 = vmatprep.subr.bf16.mxu0 0
      %1405 = vmatpush1.bf16.msra.mxu0 0
      %1406 = vmatprep.subr.bf16.mxu0 0
      %1407 = vmatpush1.bf16.msra.mxu0 0
      %1408 = vmatprep.subr.bf16.mxu0 0
      %1409 = vmatpush1.bf16.msra.mxu0 0
      %1410 = vmatprep.mubr.bf16.mxu0 0
      %1411 = vmatmul.mubr.bf16.gmra.mrb[0].mxu0 %v1376
      %v1412 = vpop.f32.mrb[0].mxu0
      %v1413 = vadd.f32 0.0, %v1412
      %v1414 = vpop.f32.mrb[0].mxu0
      %v1415 = vpop.f32.mrb[0].mxu0
      %v1416 = vpop.f32.mrb[0].mxu0
      %1417 = vdwg.mxu0
      %v1418 = vadd.f32 %v1276, %v1413
      %v1419 = vld [vmem:[#allocation2] sm:$0x3]
      %v1420 = vadd.f32 %v1419, %v1372
      %1421 = vst [vmem:[#allocation2] sm:$0x3] %v1420
      %v1422 = vld [vmem:[#allocation2 + $0x2] sm:$0x3]
      %v1423 = vadd.f32 %v1422, %v1418
      %1424 = vst [vmem:[#allocation2 + $0x2] sm:$0x3] %v1423
      %p1425 = scmp.eq.s32.totalorder %s21, 6
      // Predicated region
      $region65: #{polishnet_forward.1} parent=59 // pred_check
        %p1426 = pneg %p1425
      $region66: #{polishnet_forward.1} parent=59 // pred_check_branch
        %1428 = sbr.rel (%p1426) target = $region68
      $region67: #{polishnet_forward.1} parent=59 // pred_region
        %v1429 = vld [vmem:[#allocation2] sm:$0xff]
        %v1430 = vld [vmem:[%s5] sm:$0x1]
        %v1432 = vlaneseq
        %v1433 = vshrl.u32 %v1432, 7
        %v1434 = vsub.s32 0, %v1433
        %v1435 = vrot.slane %v1430, %v1434
        %v1437 = vadd.f32 %v1429, %v1435
        %v1438 = vmax.f32 %v1437, 0.0
        %v1439 = vlaneseq
        %v1440 = vshrl.u32 %v1439, 7
        %vm1441 = vcmp.lt.s32.totalorder %v1440, 2
        %v1442 = vsel %vm1441, 1, 0
        %vm1443 = vcmp.eq.s32.totalorder %v1442, 1
        %1445 = vrot.lane.b32.xlu0 %v1438, 64
        %v1446 = vpop.permute.xlu0 %1445
        %v1448 = vsel %vm1443, %v1438, %v1446
        %v1449 = vpack.c.bf16 %v1448, %v1448
        %v1450 = vld [vmem:[%s6] sm:$0xf]
        %v1451 = vld [vmem:[%s6 + $0x4] sm:$0xf]
        %v1452 = vld [vmem:[%s6 + $0x8] sm:$0xf]
        %v1453 = vld [vmem:[%s6 + $0xc] sm:$0xf]
        %v1454 = vld [vmem:[%s6 + $0x10] sm:$0xf]
        %v1455 = vld [vmem:[%s6 + $0x14] sm:$0xf]
        %v1456 = vld [vmem:[%s6 + $0x18] sm:$0xf]
        %v1457 = vld [vmem:[%s6 + $0x1c] sm:$0xf]
        %v1458 = vld [vmem:[%s7] sm:$0x1]
        %v1460 = vlaneseq
        %v1461 = vshrl.u32 %v1460, 7
        %v1462 = vsub.s32 0, %v1461
        %v1463 = vrot.slane %v1458, %v1462
        %v1473 = vunpack.c.l.b16 %v1450
        %v1474 = vunpack.c.l.b16 %v1451
        %v1475 = vunpack.c.l.b16 %v1452
        %v1476 = vunpack.c.l.b16 %v1453
        %v1477 = vunpack.c.l.b16 %v1454
        %v1478 = vunpack.c.l.b16 %v1455
        %v1479 = vunpack.c.l.b16 %v1456
        %v1480 = vunpack.c.l.b16 %v1457
        %v1481 = vpack.c.b16 %v1474, %v1473
        %v1482 = vpack.c.b16 %v1476, %v1475
        %v1483 = vpack.c.b16 %v1478, %v1477
        %v1484 = vpack.c.b16 %v1480, %v1479
        %vm1489 = vcmask 523264
        %v1491 = vsel %vm1489, %v1449, 0
        %1493 = vmatprep.subr.bf16.mxu0 0
        %1494 = vmatpush1.bf16.msra.mxu0 %v1481
        %1495 = vmatprep.subr.bf16.mxu0 0
        %1496 = vmatpush1.bf16.msra.mxu0 %v1482
        %1497 = vmatprep.subr.bf16.mxu0 0
        %1498 = vmatpush1.bf16.msra.mxu0 %v1483
        %1499 = vmatprep.subr.bf16.mxu0 0
        %1500 = vmatpush1.bf16.msra.mxu0 %v1484
        %1501 = vmatprep.subr.bf16.mxu0 0
        %1502 = vmatpush1.bf16.msra.mxu0 0
        %1503 = vmatprep.subr.bf16.mxu0 0
        %1504 = vmatpush1.bf16.msra.mxu0 0
        %1505 = vmatprep.subr.bf16.mxu0 0
        %1506 = vmatpush1.bf16.msra.mxu0 0
        %1507 = vmatprep.subr.bf16.mxu0 0
        %1508 = vmatpush1.bf16.msra.mxu0 0
        %1509 = vmatprep.subr.bf16.mxu0 0
        %1510 = vmatpush1.bf16.msra.mxu0 0
        %1511 = vmatprep.subr.bf16.mxu0 0
        %1512 = vmatpush1.bf16.msra.mxu0 0
        %1513 = vmatprep.subr.bf16.mxu0 0
        %1514 = vmatpush1.bf16.msra.mxu0 0
        %1515 = vmatprep.subr.bf16.mxu0 0
        %1516 = vmatpush1.bf16.msra.mxu0 0
        %1517 = vmatprep.subr.bf16.mxu0 0
        %1518 = vmatpush1.bf16.msra.mxu0 0
        %1519 = vmatprep.subr.bf16.mxu0 0
        %1520 = vmatpush1.bf16.msra.mxu0 0
        %1521 = vmatprep.subr.bf16.mxu0 0
        %1522 = vmatpush1.bf16.msra.mxu0 0
        %1523 = vmatprep.subr.bf16.mxu0 0
        %1524 = vmatpush1.bf16.msra.mxu0 0
        %1525 = vmatprep.mubr.bf16.mxu0 0
        %1526 = vmatmul.mubr.bf16.gmra.mrb[0].mxu0 %v1491
        %v1527 = vpop.f32.mrb[0].mxu0
        %v1528 = vadd.f32 %v1463, %v1527
        %v1529 = vpop.f32.mrb[0].mxu0
        %v1530 = vpop.f32.mrb[0].mxu0
        %v1531 = vpop.f32.mrb[0].mxu0
        %1532 = vdwg.mxu0
        %v1533 = vmax.f32 %v1528, 0.0
        %1535 = vrot.lane.b32.xlu0 %v1528, 64
        %v1536 = vpop.permute.xlu0 %1535
        %v1538 = vsel %vm1443, %v1533, %v1536
        %v1539 = vpack.c.bf16 %v1538, %v1538
        %v1540 = vld [vmem:[%s8] sm:$0xf]
        %v1541 = vld [vmem:[%s8 + $0x4] sm:$0xf]
        %v1542 = vld [vmem:[%s8 + $0x8] sm:$0xf]
        %v1543 = vld [vmem:[%s8 + $0xc] sm:$0xf]
        %v1544 = vld [vmem:[%s8 + $0x10] sm:$0xf]
        %v1545 = vld [vmem:[%s8 + $0x14] sm:$0xf]
        %v1546 = vld [vmem:[%s8 + $0x18] sm:$0xf]
        %v1547 = vld [vmem:[%s8 + $0x1c] sm:$0xf]
        %v1548 = vld [vmem:[%s9] sm:$0x1]
        %v1550 = vlaneseq
        %v1551 = vshrl.u32 %v1550, 7
        %v1552 = vsub.s32 0, %v1551
        %v1553 = vrot.slane %v1548, %v1552
        %v1563 = vunpack.c.l.b16 %v1540
        %v1564 = vunpack.c.l.b16 %v1541
        %v1565 = vunpack.c.l.b16 %v1542
        %v1566 = vunpack.c.l.b16 %v1543
        %v1567 = vunpack.c.l.b16 %v1544
        %v1568 = vunpack.c.l.b16 %v1545
        %v1569 = vunpack.c.l.b16 %v1546
        %v1570 = vunpack.c.l.b16 %v1547
        %v1571 = vpack.c.b16 %v1564, %v1563
        %v1572 = vpack.c.b16 %v1566, %v1565
        %v1573 = vpack.c.b16 %v1568, %v1567
        %v1574 = vpack.c.b16 %v1570, %v1569
        %v1580 = vsel %vm1489, %v1539, 0
        %1582 = vmatprep.subr.bf16.mxu0 0
        %1583 = vmatpush1.bf16.msra.mxu0 %v1571
        %1584 = vmatprep.subr.bf16.mxu0 0
        %1585 = vmatpush1.bf16.msra.mxu0 %v1572
        %1586 = vmatprep.subr.bf16.mxu0 0
        %1587 = vmatpush1.bf16.msra.mxu0 %v1573
        %1588 = vmatprep.subr.bf16.mxu0 0
        %1589 = vmatpush1.bf16.msra.mxu0 %v1574
        %1590 = vmatprep.subr.bf16.mxu0 0
        %1591 = vmatpush1.bf16.msra.mxu0 0
        %1592 = vmatprep.subr.bf16.mxu0 0
        %1593 = vmatpush1.bf16.msra.mxu0 0
        %1594 = vmatprep.subr.bf16.mxu0 0
        %1595 = vmatpush1.bf16.msra.mxu0 0
        %1596 = vmatprep.subr.bf16.mxu0 0
        %1597 = vmatpush1.bf16.msra.mxu0 0
        %1598 = vmatprep.subr.bf16.mxu0 0
        %1599 = vmatpush1.bf16.msra.mxu0 0
        %1600 = vmatprep.subr.bf16.mxu0 0
        %1601 = vmatpush1.bf16.msra.mxu0 0
        %1602 = vmatprep.subr.bf16.mxu0 0
        %1603 = vmatpush1.bf16.msra.mxu0 0
        %1604 = vmatprep.subr.bf16.mxu0 0
        %1605 = vmatpush1.bf16.msra.mxu0 0
        %1606 = vmatprep.subr.bf16.mxu0 0
        %1607 = vmatpush1.bf16.msra.mxu0 0
        %1608 = vmatprep.subr.bf16.mxu0 0
        %1609 = vmatpush1.bf16.msra.mxu0 0
        %1610 = vmatprep.subr.bf16.mxu0 0
        %1611 = vmatpush1.bf16.msra.mxu0 0
        %1612 = vmatprep.subr.bf16.mxu0 0
        %1613 = vmatpush1.bf16.msra.mxu0 0
        %1614 = vmatprep.mubr.bf16.mxu0 0
        %1615 = vmatmul.mubr.bf16.gmra.mrb[0].mxu0 %v1580
        %v1616 = vpop.f32.mrb[0].mxu0
        %v1617 = vadd.f32 %v1553, %v1616
        %v1618 = vpop.f32.mrb[0].mxu0
        %v1619 = vpop.f32.mrb[0].mxu0
        %v1620 = vpop.f32.mrb[0].mxu0
        %1621 = vdwg.mxu0
        %1622 = vst [vmem:[%s10] sm:$0xff] %v1617
      $region68: #{polishnet_forward.1} parent=59 // pred_fallthru
        _
      // Predicated region
      $region69: #{polishnet_forward.1} parent=59 // pred_check
        %p1623 = pneg %p259
      $region70: #{polishnet_forward.1} parent=59 // pred_check_branch
        %1625 = sbr.rel (%p1623) target = $region72
      $region71: #{polishnet_forward.1} parent=59 // pred_region
        _
      $region72: #{polishnet_forward.1} parent=59 // pred_fallthru
        _
      // Predicated region
      $region73: #{polishnet_forward.1} parent=59 // pred_check
        %p1626 = pneg %p259
      $region74: #{polishnet_forward.1} parent=59 // pred_check_branch
        %1628 = sbr.rel (%p1626) target = $region76
      $region75: #{polishnet_forward.1} parent=59 // pred_region
        _
      $region76: #{polishnet_forward.1} parent=59 // pred_fallthru
        _
    $region60: #{polishnet_forward.1} parent=5 // pred_fallthru
      _
    %p1629 = scmp.le.s32.totalorder 2, %s16
    // Predicated region
    $region77: #{polishnet_forward.1} parent=5 // pred_check
      %p1630 = pneg %p1629
    $region78: #{polishnet_forward.1} parent=5 // pred_check_branch
      %1632 = sbr.rel (%p1630) target = $region80
    $region79: #{polishnet_forward.1} parent=5 // pred_region
      %s1633 = ssub.s32 %s16, 2
    $region80: #{polishnet_forward.1} parent=5 // pred_fallthru
      _
  $region6: #{polishnet_forward.1} parent=0 // loop_footer
    %s20 = sadd.s32 1, %s16
  $region7: #{polishnet_forward.1} parent=0 // loop_footer_branch
    %15 = sbr.rel target = $region3
  $region8: #{polishnet_forward.1} parent=0 // loop_exit
    _

</llo_original>
